<compile_context>
chip_gen: v7x
topology: tpu7x:2x2x1
jax: 0.10.0
libtpu: 0.0.40
codegen_flags: <defaults>
</compile_context>

<pallas_src>
import functools
from typing import NamedTuple

import jax
import jax.numpy as jnp
from jax.experimental import pallas as pl
from jax.experimental.pallas import tpu as pltpu


def _round_up(a, b):
    return -(-a // b) * b


class StemCfg(NamedTuple):
    c: int
    cout: int
    kt: int
    kh: int
    kw: int
    st: int
    sh: int
    sw: int
    pt: int
    ph: int
    pw: int
    dt: int
    t_out: int
    h_out: int
    w_out: int
    m: int       # t_out * h_out * w_out (GEMM M per sample)
    k: int       # kt * kh * kw * c
    kp: int      # k rounded up to a multiple of 128 (lane-dense GEMM K)
    stride_pool: bool
    h_pool: int
    w_pool: int


def _make_cfg(dim_in, dim_out, kernel, stride, padding, dilation,
              t, h, w, stride_pool):
    kt, kh, kw = kernel
    st, sh, sw = stride
    pt, ph, pw = padding
    dt = dilation
    t_out = (t + 2 * pt - dt * (kt - 1) - 1) // st + 1
    h_out = (h + 2 * ph - (kh - 1) - 1) // sh + 1
    w_out = (w + 2 * pw - (kw - 1) - 1) // sw + 1
    k = kt * kh * kw * dim_in
    kp = _round_up(k, 128)
    m = t_out * h_out * w_out
    if stride_pool:
        h_pool = (h_out + 2 - 3) // 2 + 1
        w_pool = (w_out + 2 - 3) // 2 + 1
    else:
        h_pool, w_pool = h_out, w_out
    return StemCfg(dim_in, dim_out, kt, kh, kw, st, sh, sw, pt, ph, pw, dt,
                   t_out, h_out, w_out, m, k, kp, stride_pool, h_pool, w_pool)


# ----------------------------------------------------------------------------
# Kernels
# ----------------------------------------------------------------------------
def _conv_stats_kernel(p_ref, w_ref, y_ref, sum_ref, ssq_ref):
    """Pass 1: one (M, Kp) x (Kp, Cout) bf16 MXU GEMM per sample (f32 acc),
    writing the conv activation plus per-sample BN partial sums."""
    y = jnp.dot(p_ref[0], w_ref[...], preferred_element_type=jnp.float32)
    y_ref[0] = y
    sum_ref[0] = jnp.sum(y, axis=0, keepdims=True)
    ssq_ref[0] = jnp.sum(y * y, axis=0, keepdims=True)


def _bn_relu_pool_kernel(y_ref, scale_ref, shift_ref, o_ref, *, cfg):
    """Pass 2: BN scale/shift + ReLU + MaxPool3d([1,3,3],[1,2,2],[0,1,1]).

    Pool windows are explicit slices (exact -inf-padding semantics).  The pooled
    result is stored lane-dense as (t_out, h_pool*w_pool*cout)."""
    scale = scale_ref[...]
    shift = shift_ref[...]
    y = jnp.maximum(y_ref[0] * scale + shift, 0.0)       # (M, cout) f32

    if not cfg.stride_pool:
        o_ref[0] = y
        return

    t_out, h_out, w_out, cout = cfg.t_out, cfg.h_out, cfg.w_out, cfg.cout
    # Split the (t, h, w)-ordered row dimension; minor dims stay (w_out, cout).
    y4 = y.reshape(t_out, h_out, w_out, cout)

    pieces = []
    for i in range(cfg.h_pool):
        hlo, hhi = max(0, 2 * i - 1), min(h_out, 2 * i + 2)
        for j in range(cfg.w_pool):
            wlo, whi = max(0, 2 * j - 1), min(w_out, 2 * j + 2)
            win = y4[:, hlo:hhi, wlo:whi, :]              # (t_out, <=3, <=3, cout)
            pieces.append(jnp.max(jnp.max(win, axis=2), axis=1))   # (t_out, cout)

    # Lane-dense flattened output: (t_out, h_pool * w_pool * cout).
    o_ref[0] = jnp.concatenate(pieces, axis=-1)


# ----------------------------------------------------------------------------
# Wrapper glue (im2col / weight layout / pallas_call plumbing)
# ----------------------------------------------------------------------------
def _im2col(x_cl, cfg):
    """(N,T,H,W,C) f32 -> (N, M, Kp) bf16 patch matrix, K-order = (kt,kh,kw,c)."""
    n = x_cl.shape[0]
    xp = jnp.pad(x_cl, ((0, 0), (cfg.pt, cfg.pt), (cfg.ph, cfg.ph),
                        (cfg.pw, cfg.pw), (0, 0)))
    pieces = []
    for it in range(cfg.kt):
        t0 = it * cfg.dt
        for ih in range(cfg.kh):
            for iw in range(cfg.kw):
                sl = xp[:,
                        t0:t0 + cfg.st * (cfg.t_out - 1) + 1:cfg.st,
                        ih:ih + cfg.sh * (cfg.h_out - 1) + 1:cfg.sh,
                        iw:iw + cfg.sw * (cfg.w_out - 1) + 1:cfg.sw, :]
                pieces.append(sl)
    patch = jnp.concatenate(pieces, axis=-1)              # (N,t_out,h_out,w_out,K)
    patch = patch.reshape(n, cfg.m, cfg.k)
    if cfg.kp > cfg.k:
        patch = jnp.pad(patch, ((0, 0), (0, 0), (0, cfg.kp - cfg.k)))
    return patch.astype(jnp.bfloat16)


def _prep_weight(weight, cfg):
    # torch (Cout, Cin, kt, kh, kw) -> (kt, kh, kw, Cin, Cout) -> (Kp, Cout)
    w = jnp.transpose(weight, (2, 3, 4, 1, 0)).reshape(cfg.k, cfg.cout)
    if cfg.kp > cfg.k:
        w = jnp.pad(w, ((0, cfg.kp - cfg.k), (0, 0)))
    return w.astype(jnp.bfloat16)


@functools.partial(jax.jit, static_argnames=("cfg",))
def _stem_forward(x_ncthw, weight, gamma, beta, eps, *, cfg):
    n = x_ncthw.shape[0]
    x_cl = jnp.transpose(x_ncthw, (0, 2, 3, 4, 1)).astype(jnp.float32)
    patch = _im2col(x_cl, cfg)
    w_mat = _prep_weight(weight, cfg)

    cout, m, kp = cfg.cout, cfg.m, cfg.kp
    cparams = pltpu.CompilerParams(
        dimension_semantics=("parallel",),
        vmem_limit_bytes=32 * 1024 * 1024,
    )

    # ---- pass 1: conv GEMM + per-sample BN partial statistics -------------
    conv, psum, pssq = pl.pallas_call(
        _conv_stats_kernel,
        grid=(n,),
        in_specs=[pl.BlockSpec((1, m, kp), lambda i: (i, 0, 0)),
                  pl.BlockSpec((kp, cout), lambda i: (0, 0))],
        out_specs=(pl.BlockSpec((1, m, cout), lambda i: (i, 0, 0)),
                   pl.BlockSpec((1, 1, cout), lambda i: (i, 0, 0)),
                   pl.BlockSpec((1, 1, cout), lambda i: (i, 0, 0))),
        out_shape=(jax.ShapeDtypeStruct((n, m, cout), jnp.float32),
                   jax.ShapeDtypeStruct((n, 1, cout), jnp.float32),
                   jax.ShapeDtypeStruct((n, 1, cout), jnp.float32)),
        compiler_params=cparams,
    )(patch, w_mat)

    # BatchNorm3d training forward: batch statistics, biased variance (f32).
    count = float(n * m)
    mean = jnp.sum(psum, axis=(0, 1)) / count
    var = jnp.maximum(jnp.sum(pssq, axis=(0, 1)) / count - mean * mean, 0.0)
    inv_std = jax.lax.rsqrt(var + eps)
    scale = (gamma * inv_std).reshape(1, cout).astype(jnp.float32)
    shift = (beta - mean * gamma * inv_std).reshape(1, cout).astype(jnp.float32)
    # TODO(synk): BatchNorm running_mean/running_var momentum updates (training
    # side-state) are not emitted; they do not affect the forward output.

    # ---- pass 2: fused BN + ReLU + max pool, lane-dense output -------------
    if cfg.stride_pool:
        flat = cfg.h_pool * cfg.w_pool * cout
        out_shape = jax.ShapeDtypeStruct((n, cfg.t_out, flat), jnp.float32)
        out_spec = pl.BlockSpec((1, cfg.t_out, flat), lambda i: (i, 0, 0))
    else:
        out_shape = jax.ShapeDtypeStruct((n, m, cout), jnp.float32)
        out_spec = pl.BlockSpec((1, m, cout), lambda i: (i, 0, 0))

    y = pl.pallas_call(
        functools.partial(_bn_relu_pool_kernel, cfg=cfg),
        grid=(n,),
        in_specs=[pl.BlockSpec((1, m, cout), lambda i: (i, 0, 0)),
                  pl.BlockSpec((1, cout), lambda i: (0, 0)),
                  pl.BlockSpec((1, cout), lambda i: (0, 0))],
        out_specs=out_spec,
        out_shape=out_shape,
        compiler_params=cparams,
    )(conv, scale, shift)

    if cfg.stride_pool:
        y = y.reshape(n, cfg.t_out, cfg.h_pool, cfg.w_pool, cout)
    else:
        y = y.reshape(n, cfg.t_out, cfg.h_out, cfg.w_out, cout)
    return jnp.transpose(y, (0, 4, 1, 2, 3))   # (N,T,H,W,C) -> NCTHW


# ----------------------------------------------------------------------------
# Module wrappers (parameter setup = glue)
# ----------------------------------------------------------------------------
class PallasResNetBasicStem:
    def __init__(self, key, dim_in, dim_out, kernel, stride, padding,
                 temporal_dilation=1, eps=1e-5, stride_pool=True):
        self.dim_in = dim_in
        self.dim_out = dim_out
        self.kernel = tuple(kernel)
        self.stride = tuple(stride)
        self.padding = tuple(padding)
        self.temporal_dilation = temporal_dilation
        self.eps = eps
        self.stride_pool = stride_pool
        kt, kh, kw = self.kernel
        fan_in = dim_in * kt * kh * kw
        bound = (1.0 / fan_in) ** 0.5
        # Deterministic synthetic parameters (Conv3d has bias=False).
        self.weight = jax.random.uniform(
            key, (dim_out, dim_in, kt, kh, kw), jnp.float32, -bound, bound)
        self.gamma = 1.0 + 0.01 * jnp.arange(dim_out, dtype=jnp.float32)
        self.beta = 0.02 * jnp.arange(dim_out, dtype=jnp.float32)

    def __call__(self, x_ncthw):
        n, c, t, h, w = x_ncthw.shape
        assert c == self.dim_in
        cfg = _make_cfg(self.dim_in, self.dim_out, self.kernel, self.stride,
                        self.padding, self.temporal_dilation, t, h, w,
                        self.stride_pool)
        return _stem_forward(x_ncthw, self.weight, self.gamma, self.beta,
                             self.eps, cfg=cfg)


class PallasVideoModelStem:
    """Pallas equivalent of slowfast VideoModelStem with ResNet stems."""

    def __init__(self, dim_in, dim_out, kernel, stride, padding,
                 temporal_dilation=None, eps=1e-5,
                 stride_pool=(True, True), stems=("ResNet", "ResNet"),
                 key=None):
        if temporal_dilation is None:
            temporal_dilation = [1 for _ in range(len(padding))]
        assert len({len(dim_in), len(dim_out), len(kernel), len(stride),
                    len(padding), len(temporal_dilation)}) == 1, \
            "Input pathway dimensions are not consistent."
        if key is None:
            key = jax.random.PRNGKey(0)
        self.num_pathways = len(dim_in)
        keys = jax.random.split(key, self.num_pathways)
        self.stems = []
        for p in range(self.num_pathways):
            # TODO(synk): only the 'ResNet' entry of STEM_ZOO is implemented
            # (AudioTF / PatchEmbed / TubeEmbed stems are not exercised here).
            assert stems[p] == "ResNet"
            self.stems.append(PallasResNetBasicStem(
                keys[p], dim_in[p], dim_out[p], kernel[p], stride[p],
                padding[p], temporal_dilation[p], eps, stride_pool[p]))

    def __call__(self, xs):
        assert len(xs) == self.num_pathways, \
            "Input tensor does not contain {} pathway".format(self.num_pathways)
        return [self.stems[p](xs[p]) for p in range(self.num_pathways)]


# ----------------------------------------------------------------------------
if __name__ == "__main__":
    key = jax.random.PRNGKey(0)
    k_x0, k_x1, k_params = jax.random.split(key, 3)

    # SlowFast-style two-pathway stem at small shapes.
    stem = PallasVideoModelStem(
        dim_in=[3, 3],
        dim_out=[64, 16],
        kernel=[[1, 7, 7], [5, 7, 7]],
        stride=[[1, 2, 2], [1, 2, 2]],
        padding=[[0, 3, 3], [2, 3, 3]],
        stride_pool=(True, True),
        stems=("ResNet", "ResNet"),
        key=k_params,
    )

    # NCTHW inputs (PyTorch convention).
    x_slow = jax.random.normal(k_x0, (2, 3, 2, 16, 16), jnp.float32)
    x_fast = jax.random.normal(k_x1, (2, 3, 8, 16, 16), jnp.float32)

    outs = stem([x_slow, x_fast])
    outs = jax.block_until_ready(outs)

    assert outs[0].shape == (2, 64, 2, 4, 4), outs[0].shape
    assert outs[1].shape == (2, 16, 8, 4, 4), outs[1].shape
    assert all(bool(jnp.all(jnp.isfinite(o))) for o in outs)
    assert all(bool(jnp.all(o >= 0.0)) for o in outs)  # ReLU post-condition
    print("KERNEL_OK")
</pallas_src>

<mosaic_0001>
module attributes {stable_mosaic.version = 11 : i64} {
  func.func @_conv_stats_kernel(%arg0: i32, %arg1: memref<1x128x256xbf16, #tpu.memory_space<vmem>>, %arg2: memref<256x64xbf16, #tpu.memory_space<vmem>>, %arg3: memref<1x128x64xf32, #tpu.memory_space<vmem>>, %arg4: memref<1x1x64xf32, #tpu.memory_space<vmem>>, %arg5: memref<1x1x64xf32, #tpu.memory_space<vmem>>) attributes {dimension_semantics = [#tpu.dimension_semantics<parallel>], iteration_bounds = array<i64: 2>, scalar_prefetch = 0 : i64, scratch_operands = 0 : i64, tpu.core_type = #tpu.core_type<tc>, window_params = [{transform_indices = @transform_0, window_bounds = array<i64: 1, 128, 256>}, {pipeline_mode = #tpu.pipeline_mode<synchronous>, transform_indices = @transform_1, window_bounds = array<i64: 256, 64>}, {transform_indices = @transform_2, window_bounds = array<i64: 1, 128, 64>}, {transform_indices = @transform_3, window_bounds = array<i64: 1, 1, 64>}, {transform_indices = @transform_4, window_bounds = array<i64: 1, 1, 64>}]} {
    %c0 = arith.constant 0 : index
    %c0_0 = arith.constant 0 : index
    %c0_1 = arith.constant 0 : index
    %0 = vector.load %arg1[%c0, %c0_0, %c0_1] : memref<1x128x256xbf16, #tpu.memory_space<vmem>>, vector<1x128x256xbf16>
    %1 = vector.shape_cast %0 : vector<1x128x256xbf16> to vector<128x256xbf16>
    %c0_2 = arith.constant 0 : index
    %c0_3 = arith.constant 0 : index
    %2 = vector.load %arg2[%c0_2, %c0_3] : memref<256x64xbf16, #tpu.memory_space<vmem>>, vector<256x64xbf16>
    %cst = arith.constant dense<0.000000e+00> : vector<128x64xf32>
    %3 = tpu.matmul %1, %2, %cst {dimension_numbers = #tpu.dot_dimension_numbers<[1], [0], [0], [1], [0, 0, 1, 1], [], []>} : vector<128x256xbf16>, vector<256x64xbf16>, vector<128x64xf32> -> vector<128x64xf32>
    %c0_4 = arith.constant 0 : index
    %c0_5 = arith.constant 0 : index
    %c0_6 = arith.constant 0 : index
    %4 = vector.load %arg3[%c0_4, %c0_5, %c0_6] : memref<1x128x64xf32, #tpu.memory_space<vmem>>, vector<1x128x64xf32>
    %5 = vector.shape_cast %4 : vector<1x128x64xf32> to vector<128x64xf32>
    %6 = vector.shape_cast %3 : vector<128x64xf32> to vector<1x128x64xf32>
    tpu.vector_store %arg3[%c0_4, %c0_5, %c0_6], %6 {strides = array<i32>} : memref<1x128x64xf32, #tpu.memory_space<vmem>>, vector<1x128x64xf32>,
    %cst_7 = arith.constant dense<0.000000e+00> : vector<64xf32>
    %7 = vector.multi_reduction <add>, %3, %cst_7 [0] : vector<128x64xf32> to vector<64xf32>
    %8 = vector.shape_cast %7 : vector<64xf32> to vector<1x64xf32>
    %c0_8 = arith.constant 0 : index
    %c0_9 = arith.constant 0 : index
    %c0_10 = arith.constant 0 : index
    %9 = vector.load %arg4[%c0_8, %c0_9, %c0_10] : memref<1x1x64xf32, #tpu.memory_space<vmem>>, vector<1x1x64xf32>
    %10 = vector.shape_cast %9 : vector<1x1x64xf32> to vector<1x64xf32>
    %11 = vector.shape_cast %8 : vector<1x64xf32> to vector<1x1x64xf32>
    tpu.vector_store %arg4[%c0_8, %c0_9, %c0_10], %11 {strides = array<i32>} : memref<1x1x64xf32, #tpu.memory_space<vmem>>, vector<1x1x64xf32>,
    %12 = arith.mulf %3, %3 : vector<128x64xf32>
    %cst_11 = arith.constant dense<0.000000e+00> : vector<64xf32>
    %13 = vector.multi_reduction <add>, %12, %cst_11 [0] : vector<128x64xf32> to vector<64xf32>
    %14 = vector.shape_cast %13 : vector<64xf32> to vector<1x64xf32>
    %c0_12 = arith.constant 0 : index
    %c0_13 = arith.constant 0 : index
    %c0_14 = arith.constant 0 : index
    %15 = vector.load %arg5[%c0_12, %c0_13, %c0_14] : memref<1x1x64xf32, #tpu.memory_space<vmem>>, vector<1x1x64xf32>
    %16 = vector.shape_cast %15 : vector<1x1x64xf32> to vector<1x64xf32>
    %17 = vector.shape_cast %14 : vector<1x64xf32> to vector<1x1x64xf32>
    tpu.vector_store %arg5[%c0_12, %c0_13, %c0_14], %17 {strides = array<i32>} : memref<1x1x64xf32, #tpu.memory_space<vmem>>, vector<1x1x64xf32>,
    return
  }
  func.func @transform_0(%arg0: i32) -> (i32, i32, i32) {
    %c0_i32 = arith.constant 0 : i32
    %c0_i32_0 = arith.constant 0 : i32
    %c0_i32_1 = arith.constant 0 : i32
    return %arg0, %c0_i32, %c0_i32_0 : i32, i32, i32
  }
  func.func @transform_1(%arg0: i32) -> (i32, i32) {
    %c0_i32 = arith.constant 0 : i32
    %c0_i32_0 = arith.constant 0 : i32
    %c0_i32_1 = arith.constant 0 : i32
    return %c0_i32, %c0_i32_0 : i32, i32
  }
  func.func @transform_2(%arg0: i32) -> (i32, i32, i32) {
    %c0_i32 = arith.constant 0 : i32
    %c0_i32_0 = arith.constant 0 : i32
    %c0_i32_1 = arith.constant 0 : i32
    return %arg0, %c0_i32, %c0_i32_0 : i32, i32, i32
  }
  func.func @transform_3(%arg0: i32) -> (i32, i32, i32) {
    %c0_i32 = arith.constant 0 : i32
    %c0_i32_0 = arith.constant 0 : i32
    %c0_i32_1 = arith.constant 0 : i32
    return %arg0, %c0_i32, %c0_i32_0 : i32, i32, i32
  }
  func.func @transform_4(%arg0: i32) -> (i32, i32, i32) {
    %c0_i32 = arith.constant 0 : i32
    %c0_i32_0 = arith.constant 0 : i32
    %c0_i32_1 = arith.constant 0 : i32
    return %arg0, %c0_i32, %c0_i32_0 : i32, i32, i32
  }
}

module attributes {stable_mosaic.version = 11 : i64} {
  func.func @_bn_relu_pool_kernel(%arg0: i32, %arg1: memref<1x128x64xf32, #tpu.memory_space<vmem>>, %arg2: memref<1x64xf32, #tpu.memory_space<vmem>>, %arg3: memref<1x64xf32, #tpu.memory_space<vmem>>, %arg4: memref<1x2x1024xf32, #tpu.memory_space<vmem>>) attributes {dimension_semantics = [#tpu.dimension_semantics<parallel>], iteration_bounds = array<i64: 2>, scalar_prefetch = 0 : i64, scratch_operands = 0 : i64, tpu.core_type = #tpu.core_type<tc>, window_params = [{transform_indices = @transform_0, window_bounds = array<i64: 1, 128, 64>}, {pipeline_mode = #tpu.pipeline_mode<synchronous>, transform_indices = @transform_1, window_bounds = array<i64: 1, 64>}, {pipeline_mode = #tpu.pipeline_mode<synchronous>, transform_indices = @transform_2, window_bounds = array<i64: 1, 64>}, {transform_indices = @transform_3, window_bounds = array<i64: 1, 2, 1024>}]} {
    %c0 = arith.constant 0 : index
    %c0_0 = arith.constant 0 : index
    %0 = vector.load %arg2[%c0, %c0_0] : memref<1x64xf32, #tpu.memory_space<vmem>>, vector<1x64xf32>
    %c0_1 = arith.constant 0 : index
    %c0_2 = arith.constant 0 : index
    %1 = vector.load %arg3[%c0_1, %c0_2] : memref<1x64xf32, #tpu.memory_space<vmem>>, vector<1x64xf32>
    %c0_3 = arith.constant 0 : index
    %c0_4 = arith.constant 0 : index
    %c0_5 = arith.constant 0 : index
    %2 = vector.load %arg1[%c0_3, %c0_4, %c0_5] : memref<1x128x64xf32, #tpu.memory_space<vmem>>, vector<1x128x64xf32>
    %3 = vector.shape_cast %2 : vector<1x128x64xf32> to vector<128x64xf32>
    %4 = vector.broadcast %0 : vector<1x64xf32> to vector<128x64xf32>
    %5 = arith.mulf %3, %4 : vector<128x64xf32>
    %6 = vector.broadcast %1 : vector<1x64xf32> to vector<128x64xf32>
    %7 = arith.addf %5, %6 : vector<128x64xf32>
    %cst = arith.constant 0.000000e+00 : f32
    %8 = vector.broadcast %cst : f32 to vector<128x64xf32>
    %9 = arith.maximumf %7, %8 : vector<128x64xf32>
    %10 = vector.shape_cast %9 : vector<128x64xf32> to vector<2x8x8x64xf32>
    %11 = vector.extract_strided_slice %10 {offsets = [0, 0, 0, 0], sizes = [2, 2, 2, 64], strides = [1, 1, 1, 1]} : vector<2x8x8x64xf32> to vector<2x2x2x64xf32>
    %cst_6 = arith.constant dense<0xFF800000> : vector<2x2x64xf32>
    %12 = vector.multi_reduction <maximumf>, %11, %cst_6 [2] : vector<2x2x2x64xf32> to vector<2x2x64xf32>
    %cst_7 = arith.constant dense<0xFF800000> : vector<2x64xf32>
    %13 = vector.multi_reduction <maximumf>, %12, %cst_7 [1] : vector<2x2x64xf32> to vector<2x64xf32>
    %14 = vector.extract_strided_slice %10 {offsets = [0, 0, 1, 0], sizes = [2, 2, 3, 64], strides = [1, 1, 1, 1]} : vector<2x8x8x64xf32> to vector<2x2x3x64xf32>
    %cst_8 = arith.constant dense<0xFF800000> : vector<2x2x64xf32>
    %15 = vector.multi_reduction <maximumf>, %14, %cst_8 [2] : vector<2x2x3x64xf32> to vector<2x2x64xf32>
    %cst_9 = arith.constant dense<0xFF800000> : vector<2x64xf32>
    %16 = vector.multi_reduction <maximumf>, %15, %cst_9 [1] : vector<2x2x64xf32> to vector<2x64xf32>
    %17 = vector.extract_strided_slice %10 {offsets = [0, 0, 3, 0], sizes = [2, 2, 3, 64], strides = [1, 1, 1, 1]} : vector<2x8x8x64xf32> to vector<2x2x3x64xf32>
    %cst_10 = arith.constant dense<0xFF800000> : vector<2x2x64xf32>
    %18 = vector.multi_reduction <maximumf>, %17, %cst_10 [2] : vector<2x2x3x64xf32> to vector<2x2x64xf32>
    %cst_11 = arith.constant dense<0xFF800000> : vector<2x64xf32>
    %19 = vector.multi_reduction <maximumf>, %18, %cst_11 [1] : vector<2x2x64xf32> to vector<2x64xf32>
    %20 = vector.extract_strided_slice %10 {offsets = [0, 0, 5, 0], sizes = [2, 2, 3, 64], strides = [1, 1, 1, 1]} : vector<2x8x8x64xf32> to vector<2x2x3x64xf32>
    %cst_12 = arith.constant dense<0xFF800000> : vector<2x2x64xf32>
    %21 = vector.multi_reduction <maximumf>, %20, %cst_12 [2] : vector<2x2x3x64xf32> to vector<2x2x64xf32>
    %cst_13 = arith.constant dense<0xFF800000> : vector<2x64xf32>
    %22 = vector.multi_reduction <maximumf>, %21, %cst_13 [1] : vector<2x2x64xf32> to vector<2x64xf32>
    %23 = vector.extract_strided_slice %10 {offsets = [0, 1, 0, 0], sizes = [2, 3, 2, 64], strides = [1, 1, 1, 1]} : vector<2x8x8x64xf32> to vector<2x3x2x64xf32>
    %cst_14 = arith.constant dense<0xFF800000> : vector<2x3x64xf32>
    %24 = vector.multi_reduction <maximumf>, %23, %cst_14 [2] : vector<2x3x2x64xf32> to vector<2x3x64xf32>
    %cst_15 = arith.constant dense<0xFF800000> : vector<2x64xf32>
    %25 = vector.multi_reduction <maximumf>, %24, %cst_15 [1] : vector<2x3x64xf32> to vector<2x64xf32>
    %26 = vector.extract_strided_slice %10 {offsets = [0, 1, 1, 0], sizes = [2, 3, 3, 64], strides = [1, 1, 1, 1]} : vector<2x8x8x64xf32> to vector<2x3x3x64xf32>
    %cst_16 = arith.constant dense<0xFF800000> : vector<2x3x64xf32>
    %27 = vector.multi_reduction <maximumf>, %26, %cst_16 [2] : vector<2x3x3x64xf32> to vector<2x3x64xf32>
    %cst_17 = arith.constant dense<0xFF800000> : vector<2x64xf32>
    %28 = vector.multi_reduction <maximumf>, %27, %cst_17 [1] : vector<2x3x64xf32> to vector<2x64xf32>
    %29 = vector.extract_strided_slice %10 {offsets = [0, 1, 3, 0], sizes = [2, 3, 3, 64], strides = [1, 1, 1, 1]} : vector<2x8x8x64xf32> to vector<2x3x3x64xf32>
    %cst_18 = arith.constant dense<0xFF800000> : vector<2x3x64xf32>
    %30 = vector.multi_reduction <maximumf>, %29, %cst_18 [2] : vector<2x3x3x64xf32> to vector<2x3x64xf32>
    %cst_19 = arith.constant dense<0xFF800000> : vector<2x64xf32>
    %31 = vector.multi_reduction <maximumf>, %30, %cst_19 [1] : vector<2x3x64xf32> to vector<2x64xf32>
    %32 = vector.extract_strided_slice %10 {offsets = [0, 1, 5, 0], sizes = [2, 3, 3, 64], strides = [1, 1, 1, 1]} : vector<2x8x8x64xf32> to vector<2x3x3x64xf32>
    %cst_20 = arith.constant dense<0xFF800000> : vector<2x3x64xf32>
    %33 = vector.multi_reduction <maximumf>, %32, %cst_20 [2] : vector<2x3x3x64xf32> to vector<2x3x64xf32>
    %cst_21 = arith.constant dense<0xFF800000> : vector<2x64xf32>
    %34 = vector.multi_reduction <maximumf>, %33, %cst_21 [1] : vector<2x3x64xf32> to vector<2x64xf32>
    %35 = vector.extract_strided_slice %10 {offsets = [0, 3, 0, 0], sizes = [2, 3, 2, 64], strides = [1, 1, 1, 1]} : vector<2x8x8x64xf32> to vector<2x3x2x64xf32>
    %cst_22 = arith.constant dense<0xFF800000> : vector<2x3x64xf32>
    %36 = vector.multi_reduction <maximumf>, %35, %cst_22 [2] : vector<2x3x2x64xf32> to vector<2x3x64xf32>
    %cst_23 = arith.constant dense<0xFF800000> : vector<2x64xf32>
    %37 = vector.multi_reduction <maximumf>, %36, %cst_23 [1] : vector<2x3x64xf32> to vector<2x64xf32>
    %38 = vector.extract_strided_slice %10 {offsets = [0, 3, 1, 0], sizes = [2, 3, 3, 64], strides = [1, 1, 1, 1]} : vector<2x8x8x64xf32> to vector<2x3x3x64xf32>
    %cst_24 = arith.constant dense<0xFF800000> : vector<2x3x64xf32>
    %39 = vector.multi_reduction <maximumf>, %38, %cst_24 [2] : vector<2x3x3x64xf32> to vector<2x3x64xf32>
    %cst_25 = arith.constant dense<0xFF800000> : vector<2x64xf32>
    %40 = vector.multi_reduction <maximumf>, %39, %cst_25 [1] : vector<2x3x64xf32> to vector<2x64xf32>
    %41 = vector.extract_strided_slice %10 {offsets = [0, 3, 3, 0], sizes = [2, 3, 3, 64], strides = [1, 1, 1, 1]} : vector<2x8x8x64xf32> to vector<2x3x3x64xf32>
    %cst_26 = arith.constant dense<0xFF800000> : vector<2x3x64xf32>
    %42 = vector.multi_reduction <maximumf>, %41, %cst_26 [2] : vector<2x3x3x64xf32> to vector<2x3x64xf32>
    %cst_27 = arith.constant dense<0xFF800000> : vector<2x64xf32>
    %43 = vector.multi_reduction <maximumf>, %42, %cst_27 [1] : vector<2x3x64xf32> to vector<2x64xf32>
    %44 = vector.extract_strided_slice %10 {offsets = [0, 3, 5, 0], sizes = [2, 3, 3, 64], strides = [1, 1, 1, 1]} : vector<2x8x8x64xf32> to vector<2x3x3x64xf32>
    %cst_28 = arith.constant dense<0xFF800000> : vector<2x3x64xf32>
    %45 = vector.multi_reduction <maximumf>, %44, %cst_28 [2] : vector<2x3x3x64xf32> to vector<2x3x64xf32>
    %cst_29 = arith.constant dense<0xFF800000> : vector<2x64xf32>
    %46 = vector.multi_reduction <maximumf>, %45, %cst_29 [1] : vector<2x3x64xf32> to vector<2x64xf32>
    %47 = vector.extract_strided_slice %10 {offsets = [0, 5, 0, 0], sizes = [2, 3, 2, 64], strides = [1, 1, 1, 1]} : vector<2x8x8x64xf32> to vector<2x3x2x64xf32>
    %cst_30 = arith.constant dense<0xFF800000> : vector<2x3x64xf32>
    %48 = vector.multi_reduction <maximumf>, %47, %cst_30 [2] : vector<2x3x2x64xf32> to vector<2x3x64xf32>
    %cst_31 = arith.constant dense<0xFF800000> : vector<2x64xf32>
    %49 = vector.multi_reduction <maximumf>, %48, %cst_31 [1] : vector<2x3x64xf32> to vector<2x64xf32>
    %50 = vector.extract_strided_slice %10 {offsets = [0, 5, 1, 0], sizes = [2, 3, 3, 64], strides = [1, 1, 1, 1]} : vector<2x8x8x64xf32> to vector<2x3x3x64xf32>
    %cst_32 = arith.constant dense<0xFF800000> : vector<2x3x64xf32>
    %51 = vector.multi_reduction <maximumf>, %50, %cst_32 [2] : vector<2x3x3x64xf32> to vector<2x3x64xf32>
    %cst_33 = arith.constant dense<0xFF800000> : vector<2x64xf32>
    %52 = vector.multi_reduction <maximumf>, %51, %cst_33 [1] : vector<2x3x64xf32> to vector<2x64xf32>
    %53 = vector.extract_strided_slice %10 {offsets = [0, 5, 3, 0], sizes = [2, 3, 3, 64], strides = [1, 1, 1, 1]} : vector<2x8x8x64xf32> to vector<2x3x3x64xf32>
    %cst_34 = arith.constant dense<0xFF800000> : vector<2x3x64xf32>
    %54 = vector.multi_reduction <maximumf>, %53, %cst_34 [2] : vector<2x3x3x64xf32> to vector<2x3x64xf32>
    %cst_35 = arith.constant dense<0xFF800000> : vector<2x64xf32>
    %55 = vector.multi_reduction <maximumf>, %54, %cst_35 [1] : vector<2x3x64xf32> to vector<2x64xf32>
    %56 = vector.extract_strided_slice %10 {offsets = [0, 5, 5, 0], sizes = [2, 3, 3, 64], strides = [1, 1, 1, 1]} : vector<2x8x8x64xf32> to vector<2x3x3x64xf32>
    %cst_36 = arith.constant dense<0xFF800000> : vector<2x3x64xf32>
    %57 = vector.multi_reduction <maximumf>, %56, %cst_36 [2] : vector<2x3x3x64xf32> to vector<2x3x64xf32>
    %cst_37 = arith.constant dense<0xFF800000> : vector<2x64xf32>
    %58 = vector.multi_reduction <maximumf>, %57, %cst_37 [1] : vector<2x3x64xf32> to vector<2x64xf32>
    %59 = tpu.concatenate %13, %16, %19, %22, %25, %28, %31, %34, %37, %40, %43, %46, %49, %52, %55, %58 in 1 : vector<2x64xf32>, vector<2x64xf32>, vector<2x64xf32>, vector<2x64xf32>, vector<2x64xf32>, vector<2x64xf32>, vector<2x64xf32>, vector<2x64xf32>, vector<2x64xf32>, vector<2x64xf32>, vector<2x64xf32>, vector<2x64xf32>, vector<2x64xf32>, vector<2x64xf32>, vector<2x64xf32>, vector<2x64xf32> -> vector<2x1024xf32>
    %c0_38 = arith.constant 0 : index
    %c0_39 = arith.constant 0 : index
    %c0_40 = arith.constant 0 : index
    %60 = vector.load %arg4[%c0_38, %c0_39, %c0_40] : memref<1x2x1024xf32, #tpu.memory_space<vmem>>, vector<1x2x1024xf32>
    %61 = vector.shape_cast %60 : vector<1x2x1024xf32> to vector<2x1024xf32>
    %62 = vector.shape_cast %59 : vector<2x1024xf32> to vector<1x2x1024xf32>
    tpu.vector_store %arg4[%c0_38, %c0_39, %c0_40], %62 {strides = array<i32>} : memref<1x2x1024xf32, #tpu.memory_space<vmem>>, vector<1x2x1024xf32>,
    return
  }
  func.func @transform_0(%arg0: i32) -> (i32, i32, i32) {
    %c0_i32 = arith.constant 0 : i32
    %c0_i32_0 = arith.constant 0 : i32
    %c0_i32_1 = arith.constant 0 : i32
    return %arg0, %c0_i32, %c0_i32_0 : i32, i32, i32
  }
  func.func @transform_1(%arg0: i32) -> (i32, i32) {
    %c0_i32 = arith.constant 0 : i32
    %c0_i32_0 = arith.constant 0 : i32
    %c0_i32_1 = arith.constant 0 : i32
    return %c0_i32, %c0_i32_0 : i32, i32
  }
  func.func @transform_2(%arg0: i32) -> (i32, i32) {
    %c0_i32 = arith.constant 0 : i32
    %c0_i32_0 = arith.constant 0 : i32
    %c0_i32_1 = arith.constant 0 : i32
    return %c0_i32, %c0_i32_0 : i32, i32
  }
  func.func @transform_3(%arg0: i32) -> (i32, i32, i32) {
    %c0_i32 = arith.constant 0 : i32
    %c0_i32_0 = arith.constant 0 : i32
    %c0_i32_1 = arith.constant 0 : i32
    return %arg0, %c0_i32, %c0_i32_0 : i32, i32, i32
  }
}

</mosaic_0001>

<llo_original>
// kernel: _stem_forward.3
$region0: #{_stem_forward.3}
  #allocation0 [shape = 'u32[]', space=smem, size = 0x4, offset = 0x4, fixed_abs, tag = 'smem constant byte address 0x4 - core index']
  #allocation1 [shape = 'u32[144,128]{1,0:T(1,128)}', space=vmem, size = 0x12000, scoped, tag = 'internal scratch']
  %s0 = inlined_call_operand.vmem [shape: f32[2,128,64], index: 0, kind: input, shape index: {}]
  %s1 = inlined_call_operand.vmem [shape: f32[1,64], index: 1, kind: input, shape index: {}]
  %s2 = inlined_call_operand.vmem [shape: f32[1,64], index: 2, kind: input, shape index: {}]
  %s3 = inlined_call_operand.vmem [shape: f32[2,2,1024], index: 3, kind: output, shape index: {}]
  %s4 = sld [smem:[#allocation0]]
  $region45: #{_stem_forward.3} parent=0
    _
  %s6 = ssub.s32 1, %s4
  %s7 = scalar_select 0, %s6, %s4
  loop: start=0, step=1, limit=4
  $region2: #{_stem_forward.3} parent=0 // loop_pre_header
    _
  $region3: #{_stem_forward.3} parent=0 // loop_header
    %s9 = sphi 0, %s13
    %p10 = scmp.ge.s32.totalorder %s9, 4
    %s19 = sphi 0, %s21
    %s22 = sphi 0, %s19
    %s23 = sphi 0, %s22
    %s39 = sphi 0, %s23
    %s43 = sphi 0, %s43
    %s45 = sphi 0, %s43
    %s46 = sphi 0, %s45
    %s60 = sphi 0, %s46
    %s64 = sphi 0, %s64
    %s66 = sphi 0, %s64
    %s67 = sphi 0, %s66
    %s81 = sphi 0, %s67
    %s87 = sphi 0, %s89
    %s90 = sphi 0, %s87
    %s91 = sphi 0, %s90
    %s107 = sphi 0, %s91
  $region4: #{_stem_forward.3} parent=0 // loop_header_branch
    %12 = sbr.rel (%p10) target = $region8
  $region5: #{_stem_forward.3} parent=0 // loop_body
    %s14 = ssub.s32 %s9, 1
    %s15 = ssub.s32 %s9, 2
    %s16 = sadd.s32 %s9, 1
    %s17 = ssub.s32 %s9, %s16
    %p18 = scmp.eq.s32.totalorder %s17, 0
    %s20 = sadd.s32 %s19, 1
    %s21 = scalar_select %p18, %s19, %s20
    %p24 = pneg %p18
    %p25 = scmp.eq.s32.totalorder %s9, 1
    %p26 = por %p24, %p25
    %p27 = scmp.ne.s32.totalorder %s19, %s22
    %p28 = scmp.eq.s32.totalorder %s9, 0
    %p29 = por %p27, %p28
    %p30 = scmp.ne.s32.totalorder %s19, %s22
    %p31 = scmp.eq.s32.totalorder %s14, 1
    %p32 = por %p30, %p31
    %p33 = scmp.ne.s32.totalorder %s22, %s23
    %p34 = scmp.eq.s32.totalorder %s14, 0
    %p35 = por %p33, %p34
    %p36 = scmp.ne.s32.totalorder %s22, %s23
    %p37 = scmp.eq.s32.totalorder %s15, 1
    %p38 = por %p36, %p37
    %p40 = scmp.ne.s32.totalorder %s23, %s39
    %p41 = scmp.eq.s32.totalorder %s15, 0
    %p42 = por %p40, %p41
    %s44 = sadd.s32 %s43, 1
    %p47 = scmp.eq.s32.totalorder %s9, 1
    %p48 = scmp.ne.s32.totalorder %s43, %s45
    %p49 = scmp.eq.s32.totalorder %s9, 0
    %p50 = por %p48, %p49
    %p51 = scmp.ne.s32.totalorder %s43, %s45
    %p52 = scmp.eq.s32.totalorder %s14, 1
    %p53 = por %p51, %p52
    %p54 = scmp.ne.s32.totalorder %s45, %s46
    %p55 = scmp.eq.s32.totalorder %s14, 0
    %p56 = por %p54, %p55
    %p57 = scmp.ne.s32.totalorder %s45, %s46
    %p58 = scmp.eq.s32.totalorder %s15, 1
    %p59 = por %p57, %p58
    %p61 = scmp.ne.s32.totalorder %s46, %s60
    %p62 = scmp.eq.s32.totalorder %s15, 0
    %p63 = por %p61, %p62
    %s65 = sadd.s32 %s64, 1
    %p68 = scmp.eq.s32.totalorder %s9, 1
    %p69 = scmp.ne.s32.totalorder %s64, %s66
    %p70 = scmp.eq.s32.totalorder %s9, 0
    %p71 = por %p69, %p70
    %p72 = scmp.ne.s32.totalorder %s64, %s66
    %p73 = scmp.eq.s32.totalorder %s14, 1
    %p74 = por %p72, %p73
    %p75 = scmp.ne.s32.totalorder %s66, %s67
    %p76 = scmp.eq.s32.totalorder %s14, 0
    %p77 = por %p75, %p76
    %p78 = scmp.ne.s32.totalorder %s66, %s67
    %p79 = scmp.eq.s32.totalorder %s15, 1
    %p80 = por %p78, %p79
    %p82 = scmp.ne.s32.totalorder %s67, %s81
    %p83 = scmp.eq.s32.totalorder %s15, 0
    %p84 = por %p82, %p83
    %s85 = ssub.s32 %s9, %s16
    %p86 = scmp.eq.s32.totalorder %s85, 0
    %s88 = sadd.s32 %s87, 1
    %s89 = scalar_select %p86, %s87, %s88
    %p92 = pneg %p86
    %p93 = scmp.eq.s32.totalorder %s9, 1
    %p94 = por %p92, %p93
    %p95 = scmp.ne.s32.totalorder %s87, %s90
    %p96 = scmp.eq.s32.totalorder %s9, 0
    %p97 = por %p95, %p96
    %p98 = scmp.ne.s32.totalorder %s87, %s90
    %p99 = scmp.eq.s32.totalorder %s14, 1
    %p100 = por %p98, %p99
    %p101 = scmp.ne.s32.totalorder %s90, %s91
    %p102 = scmp.eq.s32.totalorder %s14, 0
    %p103 = por %p101, %p102
    %p104 = scmp.ne.s32.totalorder %s90, %s91
    %p105 = scmp.eq.s32.totalorder %s15, 1
    %p106 = por %p104, %p105
    %p108 = scmp.ne.s32.totalorder %s91, %s107
    %p109 = scmp.eq.s32.totalorder %s15, 0
    %p110 = por %p108, %p109
    %p111 = scmp.le.s32.totalorder 1, %s9
    %p112 = scmp.lt.s32.totalorder %s9, 3
    %p113 = pnand %p111, %p112
    %p114 = pneg %p113
    // Predicated region
    $region9: #{_stem_forward.3} parent=5 // pred_check
      _
    $region10: #{_stem_forward.3} parent=5 // pred_check_branch
      %116 = sbr.rel (%p113) target = $region12
    $region11: #{_stem_forward.3} parent=5 // pred_region
      %s117 = ssub.s32 %s9, 1
      // Predicated region
      $region13: #{_stem_forward.3} parent=11 // pred_check
        %p118 = pneg %p56
      $region14: #{_stem_forward.3} parent=11 // pred_check_branch
        %120 = sbr.rel (%p118) target = $region16
      $region15: #{_stem_forward.3} parent=11 // pred_region
        _
      $region16: #{_stem_forward.3} parent=11 // pred_fallthru
        _
      // Predicated region
      $region17: #{_stem_forward.3} parent=11 // pred_check
        %p121 = pneg %p77
      $region18: #{_stem_forward.3} parent=11 // pred_check_branch
        %123 = sbr.rel (%p121) target = $region20
      $region19: #{_stem_forward.3} parent=11 // pred_region
        _
      $region20: #{_stem_forward.3} parent=11 // pred_fallthru
        _
    $region12: #{_stem_forward.3} parent=5 // pred_fallthru
      _
    %p124 = scmp.lt.s32.totalorder %s9, 2
    // Predicated region
    $region21: #{_stem_forward.3} parent=5 // pred_check
      %p125 = pneg %p124
    $region22: #{_stem_forward.3} parent=5 // pred_check_branch
      %127 = sbr.rel (%p125) target = $region24
    $region23: #{_stem_forward.3} parent=5 // pred_region
      // Predicated region
      $region25: #{_stem_forward.3} parent=23 // pred_check
        %p128 = pneg %p29
      $region26: #{_stem_forward.3} parent=23 // pred_check_branch
        %130 = sbr.rel (%p128) target = $region28
      $region27: #{_stem_forward.3} parent=23 // pred_region
        %p131 = scmp.lt.s32.totalorder %s9, 1
        %s132 = scalar_select %p131, %s9, 1
        %s133 = smul.addr %s132, 16
        %s134 = smul.addr %s133, 8
        %s135 = scalar_lea.vmem %s0, %s134
      $region28: #{_stem_forward.3} parent=23 // pred_fallthru
        _
    $region24: #{_stem_forward.3} parent=5 // pred_fallthru
      _
    %p136 = scmp.le.s32.totalorder 1, %s9
    %p137 = scmp.lt.s32.totalorder %s9, 3
    %p138 = pnand %p136, %p137
    %p139 = pneg %p138
    // Predicated region
    $region29: #{_stem_forward.3} parent=5 // pred_check
      _
    $region30: #{_stem_forward.3} parent=5 // pred_check_branch
      %141 = sbr.rel (%p138) target = $region32
    $region31: #{_stem_forward.3} parent=5 // pred_region
      %s142 = ssub.s32 %s9, 1
      %p143 = scmp.lt.s32.totalorder %s14, 1
      %s144 = scalar_select %p143, %s14, 1
      %s145 = smul.addr %s144, 16
      %s146 = smul.addr %s145, 8
      %s147 = scalar_lea.vmem %s0, %s146
      %p148 = pneg %p35
      %p149 = pneg %p32
      %p150 = pneg %p56
      %p151 = pneg %p53
      %p152 = pneg %p77
      %p153 = pneg %p74
      %p154 = pneg %p103
      %p155 = pneg %p100
      %p156 = scmp.lt.s32.totalorder %s14, 1
      %s157 = scalar_select %p156, %s14, 1
      %s158 = smul.addr %s157, 8
      %s159 = smul.addr %s158, 2
      %s160 = scalar_lea.vmem %s3, %s159
      %p161 = scmp.lt.s32.totalorder %s14, 1
      %s162 = scalar_select %p161, %s14, 1
      %s163 = smul.addr %s162, 16
      %s164 = smul.addr %s163, 8
      %s165 = scalar_lea.vmem %s0, %s164
      %p166 = scmp.lt.s32.totalorder %s14, 1
      %s167 = scalar_select %p166, %s14, 1
      %s168 = smul.addr %s167, 8
      %s169 = smul.addr %s168, 2
      %s170 = scalar_lea.vmem %s3, %s169
      %v171 = vld [vmem:[%s1] sm:$0x1]
      %v172 = vld [vmem:[%s2] sm:$0x1]
      %v173 = vld [vmem:[%s165] sm:$0xff]
      %v174 = vld [vmem:[%s165 + $0x8] sm:$0xff]
      %v175 = vld [vmem:[%s165 + $0x10] sm:$0xff]
      %v176 = vld [vmem:[%s165 + $0x18] sm:$0xff]
      %v177 = vld [vmem:[%s165 + $0x20] sm:$0xff]
      %v178 = vld [vmem:[%s165 + $0x28] sm:$0xff]
      %v179 = vld [vmem:[%s165 + $0x30] sm:$0xff]
      %v180 = vld [vmem:[%s165 + $0x38] sm:$0xff]
      %v181 = vld [vmem:[%s165 + $0x40] sm:$0xff]
      %v182 = vld [vmem:[%s165 + $0x48] sm:$0xff]
      %v183 = vld [vmem:[%s165 + $0x50] sm:$0xff]
      %v184 = vld [vmem:[%s165 + $0x58] sm:$0xff]
      %v185 = vld [vmem:[%s165 + $0x60] sm:$0xff]
      %v186 = vld [vmem:[%s165 + $0x68] sm:$0xff]
      %v187 = vld [vmem:[%s165 + $0x70] sm:$0xff]
      %v188 = vld [vmem:[%s165 + $0x78] sm:$0xff]
      %v190 = vlaneseq
      %v191 = vshrl.u32 %v190, 7
      %v192 = vsub.s32 0, %v191
      %v193 = vrot.slane %v171, %v192
      %v195 = vmul.f32 %v173, %v193
      %v196 = vmul.f32 %v174, %v193
      %v197 = vmul.f32 %v175, %v193
      %v198 = vmul.f32 %v176, %v193
      %v199 = vmul.f32 %v177, %v193
      %v200 = vmul.f32 %v178, %v193
      %v201 = vmul.f32 %v179, %v193
      %v202 = vmul.f32 %v180, %v193
      %v203 = vmul.f32 %v181, %v193
      %v204 = vmul.f32 %v182, %v193
      %v205 = vmul.f32 %v183, %v193
      %v206 = vmul.f32 %v184, %v193
      %v207 = vmul.f32 %v185, %v193
      %v208 = vmul.f32 %v186, %v193
      %v209 = vmul.f32 %v187, %v193
      %v210 = vmul.f32 %v188, %v193
      %v212 = vlaneseq
      %v213 = vshrl.u32 %v212, 7
      %v214 = vsub.s32 0, %v213
      %v215 = vrot.slane %v172, %v214
      %v217 = vadd.f32 %v195, %v215
      %v218 = vadd.f32 %v196, %v215
      %v219 = vadd.f32 %v197, %v215
      %v220 = vadd.f32 %v198, %v215
      %v221 = vadd.f32 %v199, %v215
      %v222 = vadd.f32 %v200, %v215
      %v223 = vadd.f32 %v201, %v215
      %v224 = vadd.f32 %v202, %v215
      %v225 = vadd.f32 %v203, %v215
      %v226 = vadd.f32 %v204, %v215
      %v227 = vadd.f32 %v205, %v215
      %v228 = vadd.f32 %v206, %v215
      %v229 = vadd.f32 %v207, %v215
      %v230 = vadd.f32 %v208, %v215
      %v231 = vadd.f32 %v209, %v215
      %v232 = vadd.f32 %v210, %v215
      %v233 = vmax.f32 %v217, 0.0
      %v234 = vmax.f32 %v218, 0.0
      %v235 = vmax.f32 %v219, 0.0
      %v236 = vmax.f32 %v220, 0.0
      %v237 = vmax.f32 %v221, 0.0
      %v238 = vmax.f32 %v222, 0.0
      %v239 = vmax.f32 %v223, 0.0
      %v240 = vmax.f32 %v224, 0.0
      %v241 = vmax.f32 %v225, 0.0
      %v242 = vmax.f32 %v226, 0.0
      %v243 = vmax.f32 %v227, 0.0
      %v244 = vmax.f32 %v228, 0.0
      %v245 = vmax.f32 %v229, 0.0
      %v246 = vmax.f32 %v230, 0.0
      %v247 = vmax.f32 %v231, 0.0
      %v248 = vmax.f32 %v232, 0.0
      %vm249 = vcmask 517120
      %v250 = vsel %vm249, %v233, -inf
      %v251 = vrot.slane %v250, 4
      %v252 = vmax.f32 %v250, %v251
      %v253 = vrot.slane %v252, 2
      %v254 = vmax.f32 %v252, %v253
      %v255 = vrot.slane %v254, 1
      %v256 = vmax.f32 %v254, %v255
      %v257 = vsel %vm249, %v234, -inf
      %v258 = vrot.slane %v257, 4
      %v259 = vmax.f32 %v257, %v258
      %v260 = vrot.slane %v259, 2
      %v261 = vmax.f32 %v259, %v260
      %v262 = vrot.slane %v261, 1
      %v263 = vmax.f32 %v261, %v262
      %v264 = vsel %vm249, %v241, -inf
      %v265 = vrot.slane %v264, 4
      %v266 = vmax.f32 %v264, %v265
      %v267 = vrot.slane %v266, 2
      %v268 = vmax.f32 %v266, %v267
      %v269 = vrot.slane %v268, 1
      %v270 = vmax.f32 %v268, %v269
      %v271 = vsel %vm249, %v242, -inf
      %v272 = vrot.slane %v271, 4
      %v273 = vmax.f32 %v271, %v272
      %v274 = vrot.slane %v273, 2
      %v275 = vmax.f32 %v273, %v274
      %v276 = vrot.slane %v275, 1
      %v277 = vmax.f32 %v275, %v276
      %vm278 = vcmask 523264
      %v279 = vsel %vm278, %v256, -inf
      %v280 = vsel %vm278, %v263, -inf
      %v281 = vmax.f32 %v279, %v280
      %v282 = vsel %vm278, %v270, -inf
      %v283 = vsel %vm278, %v277, -inf
      %v284 = vmax.f32 %v282, %v283
      %vm285 = vcmask 519169
      %v286 = vsel %vm285, %v233, -inf
      %v287 = vrot.slane %v286, 4
      %v288 = vmax.f32 %v286, %v287
      %v289 = vrot.slane %v288, 2
      %v290 = vmax.f32 %v288, %v289
      %v291 = vrot.slane %v290, 1
      %v292 = vmax.f32 %v290, %v291
      %v293 = vsel %vm285, %v234, -inf
      %v294 = vrot.slane %v293, 4
      %v295 = vmax.f32 %v293, %v294
      %v296 = vrot.slane %v295, 2
      %v297 = vmax.f32 %v295, %v296
      %v298 = vrot.slane %v297, 1
      %v299 = vmax.f32 %v297, %v298
      %v300 = vsel %vm285, %v241, -inf
      %v301 = vrot.slane %v300, 4
      %v302 = vmax.f32 %v300, %v301
      %v303 = vrot.slane %v302, 2
      %v304 = vmax.f32 %v302, %v303
      %v305 = vrot.slane %v304, 1
      %v306 = vmax.f32 %v304, %v305
      %v307 = vsel %vm285, %v242, -inf
      %v308 = vrot.slane %v307, 4
      %v309 = vmax.f32 %v307, %v308
      %v310 = vrot.slane %v309, 2
      %v311 = vmax.f32 %v309, %v310
      %v312 = vrot.slane %v311, 1
      %v313 = vmax.f32 %v311, %v312
      %v314 = vsel %vm278, %v292, -inf
      %v315 = vsel %vm278, %v299, -inf
      %v316 = vmax.f32 %v314, %v315
      %v317 = vsel %vm278, %v306, -inf
      %v318 = vsel %vm278, %v313, -inf
      %v319 = vmax.f32 %v317, %v318
      %vm320 = vcmask 521219
      %v321 = vsel %vm320, %v233, -inf
      %v322 = vrot.slane %v321, 4
      %v323 = vmax.f32 %v321, %v322
      %v324 = vrot.slane %v323, 2
      %v325 = vmax.f32 %v323, %v324
      %v326 = vrot.slane %v325, 1
      %v327 = vmax.f32 %v325, %v326
      %v328 = vsel %vm320, %v234, -inf
      %v329 = vrot.slane %v328, 4
      %v330 = vmax.f32 %v328, %v329
      %v331 = vrot.slane %v330, 2
      %v332 = vmax.f32 %v330, %v331
      %v333 = vrot.slane %v332, 1
      %v334 = vmax.f32 %v332, %v333
      %v335 = vsel %vm320, %v241, -inf
      %v336 = vrot.slane %v335, 4
      %v337 = vmax.f32 %v335, %v336
      %v338 = vrot.slane %v337, 2
      %v339 = vmax.f32 %v337, %v338
      %v340 = vrot.slane %v339, 1
      %v341 = vmax.f32 %v339, %v340
      %v342 = vsel %vm320, %v242, -inf
      %v343 = vrot.slane %v342, 4
      %v344 = vmax.f32 %v342, %v343
      %v345 = vrot.slane %v344, 2
      %v346 = vmax.f32 %v344, %v345
      %v347 = vrot.slane %v346, 1
      %v348 = vmax.f32 %v346, %v347
      %v349 = vsel %vm278, %v327, -inf
      %v350 = vsel %vm278, %v334, -inf
      %v351 = vmax.f32 %v349, %v350
      %v352 = vsel %vm278, %v341, -inf
      %v353 = vsel %vm278, %v348, -inf
      %v354 = vmax.f32 %v352, %v353
      %vm355 = vcmask 523269
      %v356 = vsel %vm355, %v233, -inf
      %v357 = vrot.slane %v356, 4
      %v358 = vmax.f32 %v356, %v357
      %v359 = vrot.slane %v358, 2
      %v360 = vmax.f32 %v358, %v359
      %v361 = vrot.slane %v360, 1
      %v362 = vmax.f32 %v360, %v361
      %v363 = vsel %vm355, %v234, -inf
      %v364 = vrot.slane %v363, 4
      %v365 = vmax.f32 %v363, %v364
      %v366 = vrot.slane %v365, 2
      %v367 = vmax.f32 %v365, %v366
      %v368 = vrot.slane %v367, 1
      %v369 = vmax.f32 %v367, %v368
      %v370 = vsel %vm355, %v241, -inf
      %v371 = vrot.slane %v370, 4
      %v372 = vmax.f32 %v370, %v371
      %v373 = vrot.slane %v372, 2
      %v374 = vmax.f32 %v372, %v373
      %v375 = vrot.slane %v374, 1
      %v376 = vmax.f32 %v374, %v375
      %v377 = vsel %vm355, %v242, -inf
      %v378 = vrot.slane %v377, 4
      %v379 = vmax.f32 %v377, %v378
      %v380 = vrot.slane %v379, 2
      %v381 = vmax.f32 %v379, %v380
      %v382 = vrot.slane %v381, 1
      %v383 = vmax.f32 %v381, %v382
      %v384 = vsel %vm278, %v362, -inf
      %v385 = vsel %vm278, %v369, -inf
      %v386 = vmax.f32 %v384, %v385
      %v387 = vsel %vm278, %v376, -inf
      %v388 = vsel %vm278, %v383, -inf
      %v389 = vmax.f32 %v387, %v388
      %v390 = vsel %vm249, %v235, -inf
      %v391 = vrot.slane %v390, 4
      %v392 = vmax.f32 %v390, %v391
      %v393 = vrot.slane %v392, 2
      %v394 = vmax.f32 %v392, %v393
      %v395 = vrot.slane %v394, 1
      %v396 = vmax.f32 %v394, %v395
      %v397 = vsel %vm249, %v236, -inf
      %v398 = vrot.slane %v397, 4
      %v399 = vmax.f32 %v397, %v398
      %v400 = vrot.slane %v399, 2
      %v401 = vmax.f32 %v399, %v400
      %v402 = vrot.slane %v401, 1
      %v403 = vmax.f32 %v401, %v402
      %v404 = vsel %vm249, %v243, -inf
      %v405 = vrot.slane %v404, 4
      %v406 = vmax.f32 %v404, %v405
      %v407 = vrot.slane %v406, 2
      %v408 = vmax.f32 %v406, %v407
      %v409 = vrot.slane %v408, 1
      %v410 = vmax.f32 %v408, %v409
      %v411 = vsel %vm249, %v244, -inf
      %v412 = vrot.slane %v411, 4
      %v413 = vmax.f32 %v411, %v412
      %v414 = vrot.slane %v413, 2
      %v415 = vmax.f32 %v413, %v414
      %v416 = vrot.slane %v415, 1
      %v417 = vmax.f32 %v415, %v416
      %v418 = vsel %vm278, %v396, -inf
      %v419 = vsel %vm278, %v403, -inf
      %v420 = vmax.f32 %v280, %v419
      %v421 = vmax.f32 %v420, %v418
      %v422 = vsel %vm278, %v410, -inf
      %v423 = vsel %vm278, %v417, -inf
      %v424 = vmax.f32 %v283, %v423
      %v425 = vmax.f32 %v424, %v422
      %v426 = vsel %vm285, %v235, -inf
      %v427 = vrot.slane %v426, 4
      %v428 = vmax.f32 %v426, %v427
      %v429 = vrot.slane %v428, 2
      %v430 = vmax.f32 %v428, %v429
      %v431 = vrot.slane %v430, 1
      %v432 = vmax.f32 %v430, %v431
      %v433 = vsel %vm285, %v236, -inf
      %v434 = vrot.slane %v433, 4
      %v435 = vmax.f32 %v433, %v434
      %v436 = vrot.slane %v435, 2
      %v437 = vmax.f32 %v435, %v436
      %v438 = vrot.slane %v437, 1
      %v439 = vmax.f32 %v437, %v438
      %v440 = vsel %vm285, %v243, -inf
      %v441 = vrot.slane %v440, 4
      %v442 = vmax.f32 %v440, %v441
      %v443 = vrot.slane %v442, 2
      %v444 = vmax.f32 %v442, %v443
      %v445 = vrot.slane %v444, 1
      %v446 = vmax.f32 %v444, %v445
      %v447 = vsel %vm285, %v244, -inf
      %v448 = vrot.slane %v447, 4
      %v449 = vmax.f32 %v447, %v448
      %v450 = vrot.slane %v449, 2
      %v451 = vmax.f32 %v449, %v450
      %v452 = vrot.slane %v451, 1
      %v453 = vmax.f32 %v451, %v452
      %v454 = vsel %vm278, %v432, -inf
      %v455 = vsel %vm278, %v439, -inf
      %v456 = vmax.f32 %v315, %v455
      %v457 = vmax.f32 %v456, %v454
      %v458 = vsel %vm278, %v446, -inf
      %v459 = vsel %vm278, %v453, -inf
      %v460 = vmax.f32 %v318, %v459
      %v461 = vmax.f32 %v460, %v458
      %v462 = vsel %vm320, %v235, -inf
      %v463 = vrot.slane %v462, 4
      %v464 = vmax.f32 %v462, %v463
      %v465 = vrot.slane %v464, 2
      %v466 = vmax.f32 %v464, %v465
      %v467 = vrot.slane %v466, 1
      %v468 = vmax.f32 %v466, %v467
      %v469 = vsel %vm320, %v236, -inf
      %v470 = vrot.slane %v469, 4
      %v471 = vmax.f32 %v469, %v470
      %v472 = vrot.slane %v471, 2
      %v473 = vmax.f32 %v471, %v472
      %v474 = vrot.slane %v473, 1
      %v475 = vmax.f32 %v473, %v474
      %v476 = vsel %vm320, %v243, -inf
      %v477 = vrot.slane %v476, 4
      %v478 = vmax.f32 %v476, %v477
      %v479 = vrot.slane %v478, 2
      %v480 = vmax.f32 %v478, %v479
      %v481 = vrot.slane %v480, 1
      %v482 = vmax.f32 %v480, %v481
      %v483 = vsel %vm320, %v244, -inf
      %v484 = vrot.slane %v483, 4
      %v485 = vmax.f32 %v483, %v484
      %v486 = vrot.slane %v485, 2
      %v487 = vmax.f32 %v485, %v486
      %v488 = vrot.slane %v487, 1
      %v489 = vmax.f32 %v487, %v488
      %v490 = vsel %vm278, %v468, -inf
      %v491 = vsel %vm278, %v475, -inf
      %v492 = vmax.f32 %v350, %v491
      %v493 = vmax.f32 %v492, %v490
      %v494 = vsel %vm278, %v482, -inf
      %v495 = vsel %vm278, %v489, -inf
      %v496 = vmax.f32 %v353, %v495
      %v497 = vmax.f32 %v496, %v494
      %v498 = vsel %vm355, %v235, -inf
      %v499 = vrot.slane %v498, 4
      %v500 = vmax.f32 %v498, %v499
      %v501 = vrot.slane %v500, 2
      %v502 = vmax.f32 %v500, %v501
      %v503 = vrot.slane %v502, 1
      %v504 = vmax.f32 %v502, %v503
      %v505 = vsel %vm355, %v236, -inf
      %v506 = vrot.slane %v505, 4
      %v507 = vmax.f32 %v505, %v506
      %v508 = vrot.slane %v507, 2
      %v509 = vmax.f32 %v507, %v508
      %v510 = vrot.slane %v509, 1
      %v511 = vmax.f32 %v509, %v510
      %v512 = vsel %vm355, %v243, -inf
      %v513 = vrot.slane %v512, 4
      %v514 = vmax.f32 %v512, %v513
      %v515 = vrot.slane %v514, 2
      %v516 = vmax.f32 %v514, %v515
      %v517 = vrot.slane %v516, 1
      %v518 = vmax.f32 %v516, %v517
      %v519 = vsel %vm355, %v244, -inf
      %v520 = vrot.slane %v519, 4
      %v521 = vmax.f32 %v519, %v520
      %v522 = vrot.slane %v521, 2
      %v523 = vmax.f32 %v521, %v522
      %v524 = vrot.slane %v523, 1
      %v525 = vmax.f32 %v523, %v524
      %v526 = vsel %vm278, %v504, -inf
      %v527 = vsel %vm278, %v511, -inf
      %v528 = vmax.f32 %v385, %v527
      %v529 = vmax.f32 %v528, %v526
      %v530 = vsel %vm278, %v518, -inf
      %v531 = vsel %vm278, %v525, -inf
      %v532 = vmax.f32 %v388, %v531
      %v533 = vmax.f32 %v532, %v530
      %v534 = vsel %vm249, %v237, -inf
      %v535 = vrot.slane %v534, 4
      %v536 = vmax.f32 %v534, %v535
      %v537 = vrot.slane %v536, 2
      %v538 = vmax.f32 %v536, %v537
      %v539 = vrot.slane %v538, 1
      %v540 = vmax.f32 %v538, %v539
      %v541 = vsel %vm249, %v238, -inf
      %v542 = vrot.slane %v541, 4
      %v543 = vmax.f32 %v541, %v542
      %v544 = vrot.slane %v543, 2
      %v545 = vmax.f32 %v543, %v544
      %v546 = vrot.slane %v545, 1
      %v547 = vmax.f32 %v545, %v546
      %v548 = vsel %vm249, %v245, -inf
      %v549 = vrot.slane %v548, 4
      %v550 = vmax.f32 %v548, %v549
      %v551 = vrot.slane %v550, 2
      %v552 = vmax.f32 %v550, %v551
      %v553 = vrot.slane %v552, 1
      %v554 = vmax.f32 %v552, %v553
      %v555 = vsel %vm249, %v246, -inf
      %v556 = vrot.slane %v555, 4
      %v557 = vmax.f32 %v555, %v556
      %v558 = vrot.slane %v557, 2
      %v559 = vmax.f32 %v557, %v558
      %v560 = vrot.slane %v559, 1
      %v561 = vmax.f32 %v559, %v560
      %v562 = vsel %vm278, %v540, -inf
      %v563 = vsel %vm278, %v547, -inf
      %v564 = vmax.f32 %v419, %v563
      %v565 = vmax.f32 %v564, %v562
      %v566 = vsel %vm278, %v554, -inf
      %v567 = vsel %vm278, %v561, -inf
      %v568 = vmax.f32 %v423, %v567
      %v569 = vmax.f32 %v568, %v566
      %v570 = vsel %vm285, %v237, -inf
      %v571 = vrot.slane %v570, 4
      %v572 = vmax.f32 %v570, %v571
      %v573 = vrot.slane %v572, 2
      %v574 = vmax.f32 %v572, %v573
      %v575 = vrot.slane %v574, 1
      %v576 = vmax.f32 %v574, %v575
      %v577 = vsel %vm285, %v238, -inf
      %v578 = vrot.slane %v577, 4
      %v579 = vmax.f32 %v577, %v578
      %v580 = vrot.slane %v579, 2
      %v581 = vmax.f32 %v579, %v580
      %v582 = vrot.slane %v581, 1
      %v583 = vmax.f32 %v581, %v582
      %v584 = vsel %vm285, %v245, -inf
      %v585 = vrot.slane %v584, 4
      %v586 = vmax.f32 %v584, %v585
      %v587 = vrot.slane %v586, 2
      %v588 = vmax.f32 %v586, %v587
      %v589 = vrot.slane %v588, 1
      %v590 = vmax.f32 %v588, %v589
      %v591 = vsel %vm285, %v246, -inf
      %v592 = vrot.slane %v591, 4
      %v593 = vmax.f32 %v591, %v592
      %v594 = vrot.slane %v593, 2
      %v595 = vmax.f32 %v593, %v594
      %v596 = vrot.slane %v595, 1
      %v597 = vmax.f32 %v595, %v596
      %v598 = vsel %vm278, %v576, -inf
      %v599 = vsel %vm278, %v583, -inf
      %v600 = vmax.f32 %v455, %v599
      %v601 = vmax.f32 %v600, %v598
      %v602 = vsel %vm278, %v590, -inf
      %v603 = vsel %vm278, %v597, -inf
      %v604 = vmax.f32 %v459, %v603
      %v605 = vmax.f32 %v604, %v602
      %v606 = vsel %vm320, %v237, -inf
      %v607 = vrot.slane %v606, 4
      %v608 = vmax.f32 %v606, %v607
      %v609 = vrot.slane %v608, 2
      %v610 = vmax.f32 %v608, %v609
      %v611 = vrot.slane %v610, 1
      %v612 = vmax.f32 %v610, %v611
      %v613 = vsel %vm320, %v238, -inf
      %v614 = vrot.slane %v613, 4
      %v615 = vmax.f32 %v613, %v614
      %v616 = vrot.slane %v615, 2
      %v617 = vmax.f32 %v615, %v616
      %v618 = vrot.slane %v617, 1
      %v619 = vmax.f32 %v617, %v618
      %v620 = vsel %vm320, %v245, -inf
      %v621 = vrot.slane %v620, 4
      %v622 = vmax.f32 %v620, %v621
      %v623 = vrot.slane %v622, 2
      %v624 = vmax.f32 %v622, %v623
      %v625 = vrot.slane %v624, 1
      %v626 = vmax.f32 %v624, %v625
      %v627 = vsel %vm320, %v246, -inf
      %v628 = vrot.slane %v627, 4
      %v629 = vmax.f32 %v627, %v628
      %v630 = vrot.slane %v629, 2
      %v631 = vmax.f32 %v629, %v630
      %v632 = vrot.slane %v631, 1
      %v633 = vmax.f32 %v631, %v632
      %v634 = vsel %vm278, %v612, -inf
      %v635 = vsel %vm278, %v619, -inf
      %v636 = vmax.f32 %v491, %v635
      %v637 = vmax.f32 %v636, %v634
      %v638 = vsel %vm278, %v626, -inf
      %v639 = vsel %vm278, %v633, -inf
      %v640 = vmax.f32 %v495, %v639
      %v641 = vmax.f32 %v640, %v638
      %v642 = vsel %vm355, %v237, -inf
      %v643 = vrot.slane %v642, 4
      %v644 = vmax.f32 %v642, %v643
      %v645 = vrot.slane %v644, 2
      %v646 = vmax.f32 %v644, %v645
      %v647 = vrot.slane %v646, 1
      %v648 = vmax.f32 %v646, %v647
      %v649 = vsel %vm355, %v238, -inf
      %v650 = vrot.slane %v649, 4
      %v651 = vmax.f32 %v649, %v650
      %v652 = vrot.slane %v651, 2
      %v653 = vmax.f32 %v651, %v652
      %v654 = vrot.slane %v653, 1
      %v655 = vmax.f32 %v653, %v654
      %v656 = vsel %vm355, %v245, -inf
      %v657 = vrot.slane %v656, 4
      %v658 = vmax.f32 %v656, %v657
      %v659 = vrot.slane %v658, 2
      %v660 = vmax.f32 %v658, %v659
      %v661 = vrot.slane %v660, 1
      %v662 = vmax.f32 %v660, %v661
      %v663 = vsel %vm355, %v246, -inf
      %v664 = vrot.slane %v663, 4
      %v665 = vmax.f32 %v663, %v664
      %v666 = vrot.slane %v665, 2
      %v667 = vmax.f32 %v665, %v666
      %v668 = vrot.slane %v667, 1
      %v669 = vmax.f32 %v667, %v668
      %v670 = vsel %vm278, %v648, -inf
      %v671 = vsel %vm278, %v655, -inf
      %v672 = vmax.f32 %v527, %v671
      %v673 = vmax.f32 %v672, %v670
      %v674 = vsel %vm278, %v662, -inf
      %v675 = vsel %vm278, %v669, -inf
      %v676 = vmax.f32 %v531, %v675
      %v677 = vmax.f32 %v676, %v674
      %v678 = vsel %vm249, %v239, -inf
      %v679 = vrot.slane %v678, 4
      %v680 = vmax.f32 %v678, %v679
      %v681 = vrot.slane %v680, 2
      %v682 = vmax.f32 %v680, %v681
      %v683 = vrot.slane %v682, 1
      %v684 = vmax.f32 %v682, %v683
      %v685 = vsel %vm249, %v240, -inf
      %v686 = vrot.slane %v685, 4
      %v687 = vmax.f32 %v685, %v686
      %v688 = vrot.slane %v687, 2
      %v689 = vmax.f32 %v687, %v688
      %v690 = vrot.slane %v689, 1
      %v691 = vmax.f32 %v689, %v690
      %v692 = vsel %vm249, %v247, -inf
      %v693 = vrot.slane %v692, 4
      %v694 = vmax.f32 %v692, %v693
      %v695 = vrot.slane %v694, 2
      %v696 = vmax.f32 %v694, %v695
      %v697 = vrot.slane %v696, 1
      %v698 = vmax.f32 %v696, %v697
      %v699 = vsel %vm249, %v248, -inf
      %v700 = vrot.slane %v699, 4
      %v701 = vmax.f32 %v699, %v700
      %v702 = vrot.slane %v701, 2
      %v703 = vmax.f32 %v701, %v702
      %v704 = vrot.slane %v703, 1
      %v705 = vmax.f32 %v703, %v704
      %v706 = vsel %vm278, %v684, -inf
      %v707 = vsel %vm278, %v691, -inf
      %v708 = vmax.f32 %v563, %v707
      %v709 = vmax.f32 %v708, %v706
      %v710 = vsel %vm278, %v698, -inf
      %v711 = vsel %vm278, %v705, -inf
      %v712 = vmax.f32 %v567, %v711
      %v713 = vmax.f32 %v712, %v710
      %v714 = vsel %vm285, %v239, -inf
      %v715 = vrot.slane %v714, 4
      %v716 = vmax.f32 %v714, %v715
      %v717 = vrot.slane %v716, 2
      %v718 = vmax.f32 %v716, %v717
      %v719 = vrot.slane %v718, 1
      %v720 = vmax.f32 %v718, %v719
      %v721 = vsel %vm285, %v240, -inf
      %v722 = vrot.slane %v721, 4
      %v723 = vmax.f32 %v721, %v722
      %v724 = vrot.slane %v723, 2
      %v725 = vmax.f32 %v723, %v724
      %v726 = vrot.slane %v725, 1
      %v727 = vmax.f32 %v725, %v726
      %v728 = vsel %vm285, %v247, -inf
      %v729 = vrot.slane %v728, 4
      %v730 = vmax.f32 %v728, %v729
      %v731 = vrot.slane %v730, 2
      %v732 = vmax.f32 %v730, %v731
      %v733 = vrot.slane %v732, 1
      %v734 = vmax.f32 %v732, %v733
      %v735 = vsel %vm285, %v248, -inf
      %v736 = vrot.slane %v735, 4
      %v737 = vmax.f32 %v735, %v736
      %v738 = vrot.slane %v737, 2
      %v739 = vmax.f32 %v737, %v738
      %v740 = vrot.slane %v739, 1
      %v741 = vmax.f32 %v739, %v740
      %v742 = vsel %vm278, %v720, -inf
      %v743 = vsel %vm278, %v727, -inf
      %v744 = vmax.f32 %v599, %v743
      %v745 = vmax.f32 %v744, %v742
      %v746 = vsel %vm278, %v734, -inf
      %v747 = vsel %vm278, %v741, -inf
      %v748 = vmax.f32 %v603, %v747
      %v749 = vmax.f32 %v748, %v746
      %v750 = vsel %vm320, %v239, -inf
      %v751 = vrot.slane %v750, 4
      %v752 = vmax.f32 %v750, %v751
      %v753 = vrot.slane %v752, 2
      %v754 = vmax.f32 %v752, %v753
      %v755 = vrot.slane %v754, 1
      %v756 = vmax.f32 %v754, %v755
      %v757 = vsel %vm320, %v240, -inf
      %v758 = vrot.slane %v757, 4
      %v759 = vmax.f32 %v757, %v758
      %v760 = vrot.slane %v759, 2
      %v761 = vmax.f32 %v759, %v760
      %v762 = vrot.slane %v761, 1
      %v763 = vmax.f32 %v761, %v762
      %v764 = vsel %vm320, %v247, -inf
      %v765 = vrot.slane %v764, 4
      %v766 = vmax.f32 %v764, %v765
      %v767 = vrot.slane %v766, 2
      %v768 = vmax.f32 %v766, %v767
      %v769 = vrot.slane %v768, 1
      %v770 = vmax.f32 %v768, %v769
      %v771 = vsel %vm320, %v248, -inf
      %v772 = vrot.slane %v771, 4
      %v773 = vmax.f32 %v771, %v772
      %v774 = vrot.slane %v773, 2
      %v775 = vmax.f32 %v773, %v774
      %v776 = vrot.slane %v775, 1
      %v777 = vmax.f32 %v775, %v776
      %v778 = vsel %vm278, %v756, -inf
      %v779 = vsel %vm278, %v763, -inf
      %v780 = vmax.f32 %v635, %v779
      %v781 = vmax.f32 %v780, %v778
      %v782 = vsel %vm278, %v770, -inf
      %v783 = vsel %vm278, %v777, -inf
      %v784 = vmax.f32 %v639, %v783
      %v785 = vmax.f32 %v784, %v782
      %v786 = vsel %vm355, %v239, -inf
      %v787 = vrot.slane %v786, 4
      %v788 = vmax.f32 %v786, %v787
      %v789 = vrot.slane %v788, 2
      %v790 = vmax.f32 %v788, %v789
      %v791 = vrot.slane %v790, 1
      %v792 = vmax.f32 %v790, %v791
      %v793 = vsel %vm355, %v240, -inf
      %v794 = vrot.slane %v793, 4
      %v795 = vmax.f32 %v793, %v794
      %v796 = vrot.slane %v795, 2
      %v797 = vmax.f32 %v795, %v796
      %v798 = vrot.slane %v797, 1
      %v799 = vmax.f32 %v797, %v798
      %v800 = vsel %vm355, %v247, -inf
      %v801 = vrot.slane %v800, 4
      %v802 = vmax.f32 %v800, %v801
      %v803 = vrot.slane %v802, 2
      %v804 = vmax.f32 %v802, %v803
      %v805 = vrot.slane %v804, 1
      %v806 = vmax.f32 %v804, %v805
      %v807 = vsel %vm355, %v248, -inf
      %v808 = vrot.slane %v807, 4
      %v809 = vmax.f32 %v807, %v808
      %v810 = vrot.slane %v809, 2
      %v811 = vmax.f32 %v809, %v810
      %v812 = vrot.slane %v811, 1
      %v813 = vmax.f32 %v811, %v812
      %v814 = vsel %vm278, %v792, -inf
      %v815 = vsel %vm278, %v799, -inf
      %v816 = vmax.f32 %v671, %v815
      %v817 = vmax.f32 %v816, %v814
      %v818 = vsel %vm278, %v806, -inf
      %v819 = vsel %vm278, %v813, -inf
      %v820 = vmax.f32 %v675, %v819
      %v821 = vmax.f32 %v820, %v818
      %vm824 = vcmask 1041409
      %v825 = vsel %vm824, %v284, %v281
      %v829 = vsel %vm824, %v319, %v316
      %830 = vrot.lane.b32.xlu0 %v829, 64
      %v831 = vpop.permute.xlu0 %830
      %v835 = vsel %vm824, %v354, %v351
      %v839 = vsel %vm824, %v389, %v386
      %840 = vrot.lane.b32.xlu0 %v839, 64
      %v841 = vpop.permute.xlu0 %840
      %v845 = vsel %vm824, %v425, %v421
      %v849 = vsel %vm824, %v461, %v457
      %850 = vrot.lane.b32.xlu0 %v849, 64
      %v851 = vpop.permute.xlu0 %850
      %v855 = vsel %vm824, %v497, %v493
      %v859 = vsel %vm824, %v533, %v529
      %860 = vrot.lane.b32.xlu0 %v859, 64
      %v861 = vpop.permute.xlu0 %860
      %v865 = vsel %vm824, %v569, %v565
      %v869 = vsel %vm824, %v605, %v601
      %870 = vrot.lane.b32.xlu0 %v869, 64
      %v871 = vpop.permute.xlu0 %870
      %v875 = vsel %vm824, %v641, %v637
      %v879 = vsel %vm824, %v677, %v673
      %880 = vrot.lane.b32.xlu0 %v879, 64
      %v881 = vpop.permute.xlu0 %880
      %v885 = vsel %vm824, %v713, %v709
      %v889 = vsel %vm824, %v749, %v745
      %890 = vrot.lane.b32.xlu0 %v889, 64
      %v891 = vpop.permute.xlu0 %890
      %v895 = vsel %vm824, %v785, %v781
      %v899 = vsel %vm824, %v821, %v817
      %900 = vrot.lane.b32.xlu0 %v899, 64
      %v901 = vpop.permute.xlu0 %900
      %v903 = vsel %vm278, %v825, %v831
      %v904 = vsel %vm278, %v835, %v841
      %v905 = vsel %vm278, %v845, %v851
      %v906 = vsel %vm278, %v855, %v861
      %v907 = vsel %vm278, %v865, %v871
      %v908 = vsel %vm278, %v875, %v881
      %v909 = vsel %vm278, %v885, %v891
      %v910 = vsel %vm278, %v895, %v901
      %v919 = vcombine.low %v903, %v904
      %v920 = vcombine.low %v905, %v906
      %v922 = vunpack.c.l.s4 1983009808
      %v923 = vunpack.c.0.s8 %v922
      %v924 = vlaneseq
      %v925 = vshrl.u32 %v924, 7
      %v926 = vsub.s32 %v923, %v925
      %v927 = vrot.slane %v919, %v926
      %v929 = vunpack.c.l.s4 1983009808
      %v930 = vunpack.c.0.s8 %v929
      %v931 = vlaneseq
      %v932 = vshrl.u32 %v931, 7
      %v933 = vsub.s32 %v930, %v932
      %v934 = vrot.slane %v920, %v933
      %v935 = vcombine.low %v927, %v934
      %v936 = vcombine.low %v907, %v908
      %v937 = vcombine.low %v909, %v910
      %v939 = vunpack.c.l.s4 1983009808
      %v940 = vunpack.c.0.s8 %v939
      %v941 = vlaneseq
      %v942 = vshrl.u32 %v941, 7
      %v943 = vsub.s32 %v940, %v942
      %v944 = vrot.slane %v936, %v943
      %v946 = vunpack.c.l.s4 1983009808
      %v947 = vunpack.c.0.s8 %v946
      %v948 = vlaneseq
      %v949 = vshrl.u32 %v948, 7
      %v950 = vsub.s32 %v947, %v949
      %v951 = vrot.slane %v937, %v950
      %v952 = vcombine.low %v944, %v951
      %955 = vst [vmem:[%s170] sm:$0xff] %v935
      %956 = vst [vmem:[%s170 + $0x8] sm:$0xff] %v952
      %p957 = scmp.lt.s32.totalorder %s14, 1
      %s958 = scalar_select %p957, %s14, 1
      %s959 = smul.addr %s958, 8
      %s960 = smul.addr %s959, 2
      %s961 = scalar_lea.vmem %s3, %s960
      // Predicated region
      $region33: #{_stem_forward.3} parent=31 // pred_check
        %p962 = pneg %p100
      $region34: #{_stem_forward.3} parent=31 // pred_check_branch
        %964 = sbr.rel (%p962) target = $region36
      $region35: #{_stem_forward.3} parent=31 // pred_region
        _
      $region36: #{_stem_forward.3} parent=31 // pred_fallthru
        _
    $region32: #{_stem_forward.3} parent=5 // pred_fallthru
      _
    %p965 = scmp.le.s32.totalorder 2, %s9
    // Predicated region
    $region37: #{_stem_forward.3} parent=5 // pred_check
      %p966 = pneg %p965
    $region38: #{_stem_forward.3} parent=5 // pred_check_branch
      %968 = sbr.rel (%p966) target = $region40
    $region39: #{_stem_forward.3} parent=5 // pred_region
      %s969 = ssub.s32 %s9, 2
      // Predicated region
      $region41: #{_stem_forward.3} parent=39 // pred_check
        %p970 = pneg %p106
      $region42: #{_stem_forward.3} parent=39 // pred_check_branch
        %972 = sbr.rel (%p970) target = $region44
      $region43: #{_stem_forward.3} parent=39 // pred_region
        %p973 = scmp.lt.s32.totalorder %s15, 1
        %s974 = scalar_select %p973, %s15, 1
        %s975 = smul.addr %s974, 8
        %s976 = smul.addr %s975, 2
        %s977 = scalar_lea.vmem %s3, %s976
      $region44: #{_stem_forward.3} parent=39 // pred_fallthru
        _
    $region40: #{_stem_forward.3} parent=5 // pred_fallthru
      _
  $region6: #{_stem_forward.3} parent=0 // loop_footer
    %s13 = sadd.s32 1, %s9
  $region7: #{_stem_forward.3} parent=0 // loop_footer_branch
    %8 = sbr.rel target = $region3
  $region8: #{_stem_forward.3} parent=0 // loop_exit
    _

// kernel: _stem_forward.2
$region0: #{_stem_forward.2}
  #allocation0 [shape = 'u32[]', space=smem, size = 0x4, offset = 0x4, fixed_abs, tag = 'smem constant byte address 0x4 - core index']
  #allocation1 [shape = 'u32[144,128]{1,0:T(1,128)}', space=vmem, size = 0x12000, scoped, tag = 'internal scratch']
  %s0 = inlined_call_operand.vmem [shape: bf16[2,128,256], index: 0, kind: input, shape index: {}]
  %s1 = inlined_call_operand.vmem [shape: bf16[256,64], index: 1, kind: input, shape index: {}]
  %s2 = inlined_call_operand.vmem [shape: f32[2,128,64], index: 2, kind: output, shape index: {0}]
  %s3 = inlined_call_operand.vmem [shape: f32[2,1,64], index: 3, kind: output, shape index: {1}]
  %s4 = inlined_call_operand.vmem [shape: f32[2,1,64], index: 4, kind: output, shape index: {2}]
  %5 = xla_tuple %s2, %s3, %s4
  %s6 = sld [smem:[#allocation0]]
  $region57: #{_stem_forward.2} parent=0
    _
  %s8 = ssub.s32 1, %s6
  %s9 = scalar_select 0, %s8, %s6
  loop: start=0, step=1, limit=4
  $region2: #{_stem_forward.2} parent=0 // loop_pre_header
    _
  $region3: #{_stem_forward.2} parent=0 // loop_header
    %s11 = sphi 0, %s15
    %p12 = scmp.ge.s32.totalorder %s11, 4
    %s21 = sphi 0, %s23
    %s24 = sphi 0, %s21
    %s25 = sphi 0, %s24
    %s41 = sphi 0, %s25
    %s45 = sphi 0, %s45
    %s47 = sphi 0, %s45
    %s48 = sphi 0, %s47
    %s62 = sphi 0, %s48
    %s68 = sphi 0, %s70
    %s71 = sphi 0, %s68
    %s72 = sphi 0, %s71
    %s88 = sphi 0, %s72
    %s94 = sphi 0, %s96
    %s97 = sphi 0, %s94
    %s98 = sphi 0, %s97
    %s114 = sphi 0, %s98
    %s120 = sphi 0, %s122
    %s123 = sphi 0, %s120
    %s124 = sphi 0, %s123
    %s140 = sphi 0, %s124
  $region4: #{_stem_forward.2} parent=0 // loop_header_branch
    %14 = sbr.rel (%p12) target = $region8
  $region5: #{_stem_forward.2} parent=0 // loop_body
    %s16 = ssub.s32 %s11, 1
    %s17 = ssub.s32 %s11, 2
    %s18 = sadd.s32 %s11, 1
    %s19 = ssub.s32 %s11, %s18
    %p20 = scmp.eq.s32.totalorder %s19, 0
    %s22 = sadd.s32 %s21, 1
    %s23 = scalar_select %p20, %s21, %s22
    %p26 = pneg %p20
    %p27 = scmp.eq.s32.totalorder %s11, 1
    %p28 = por %p26, %p27
    %p29 = scmp.ne.s32.totalorder %s21, %s24
    %p30 = scmp.eq.s32.totalorder %s11, 0
    %p31 = por %p29, %p30
    %p32 = scmp.ne.s32.totalorder %s21, %s24
    %p33 = scmp.eq.s32.totalorder %s16, 1
    %p34 = por %p32, %p33
    %p35 = scmp.ne.s32.totalorder %s24, %s25
    %p36 = scmp.eq.s32.totalorder %s16, 0
    %p37 = por %p35, %p36
    %p38 = scmp.ne.s32.totalorder %s24, %s25
    %p39 = scmp.eq.s32.totalorder %s17, 1
    %p40 = por %p38, %p39
    %p42 = scmp.ne.s32.totalorder %s25, %s41
    %p43 = scmp.eq.s32.totalorder %s17, 0
    %p44 = por %p42, %p43
    %s46 = sadd.s32 %s45, 1
    %p49 = scmp.eq.s32.totalorder %s11, 1
    %p50 = scmp.ne.s32.totalorder %s45, %s47
    %p51 = scmp.eq.s32.totalorder %s11, 0
    %p52 = por %p50, %p51
    %p53 = scmp.ne.s32.totalorder %s45, %s47
    %p54 = scmp.eq.s32.totalorder %s16, 1
    %p55 = por %p53, %p54
    %p56 = scmp.ne.s32.totalorder %s47, %s48
    %p57 = scmp.eq.s32.totalorder %s16, 0
    %p58 = por %p56, %p57
    %p59 = scmp.ne.s32.totalorder %s47, %s48
    %p60 = scmp.eq.s32.totalorder %s17, 1
    %p61 = por %p59, %p60
    %p63 = scmp.ne.s32.totalorder %s48, %s62
    %p64 = scmp.eq.s32.totalorder %s17, 0
    %p65 = por %p63, %p64
    %s66 = ssub.s32 %s11, %s18
    %p67 = scmp.eq.s32.totalorder %s66, 0
    %s69 = sadd.s32 %s68, 1
    %s70 = scalar_select %p67, %s68, %s69
    %p73 = pneg %p67
    %p74 = scmp.eq.s32.totalorder %s11, 1
    %p75 = por %p73, %p74
    %p76 = scmp.ne.s32.totalorder %s68, %s71
    %p77 = scmp.eq.s32.totalorder %s11, 0
    %p78 = por %p76, %p77
    %p79 = scmp.ne.s32.totalorder %s68, %s71
    %p80 = scmp.eq.s32.totalorder %s16, 1
    %p81 = por %p79, %p80
    %p82 = scmp.ne.s32.totalorder %s71, %s72
    %p83 = scmp.eq.s32.totalorder %s16, 0
    %p84 = por %p82, %p83
    %p85 = scmp.ne.s32.totalorder %s71, %s72
    %p86 = scmp.eq.s32.totalorder %s17, 1
    %p87 = por %p85, %p86
    %p89 = scmp.ne.s32.totalorder %s72, %s88
    %p90 = scmp.eq.s32.totalorder %s17, 0
    %p91 = por %p89, %p90
    %s92 = ssub.s32 %s11, %s18
    %p93 = scmp.eq.s32.totalorder %s92, 0
    %s95 = sadd.s32 %s94, 1
    %s96 = scalar_select %p93, %s94, %s95
    %p99 = pneg %p93
    %p100 = scmp.eq.s32.totalorder %s11, 1
    %p101 = por %p99, %p100
    %p102 = scmp.ne.s32.totalorder %s94, %s97
    %p103 = scmp.eq.s32.totalorder %s11, 0
    %p104 = por %p102, %p103
    %p105 = scmp.ne.s32.totalorder %s94, %s97
    %p106 = scmp.eq.s32.totalorder %s16, 1
    %p107 = por %p105, %p106
    %p108 = scmp.ne.s32.totalorder %s97, %s98
    %p109 = scmp.eq.s32.totalorder %s16, 0
    %p110 = por %p108, %p109
    %p111 = scmp.ne.s32.totalorder %s97, %s98
    %p112 = scmp.eq.s32.totalorder %s17, 1
    %p113 = por %p111, %p112
    %p115 = scmp.ne.s32.totalorder %s98, %s114
    %p116 = scmp.eq.s32.totalorder %s17, 0
    %p117 = por %p115, %p116
    %s118 = ssub.s32 %s11, %s18
    %p119 = scmp.eq.s32.totalorder %s118, 0
    %s121 = sadd.s32 %s120, 1
    %s122 = scalar_select %p119, %s120, %s121
    %p125 = pneg %p119
    %p126 = scmp.eq.s32.totalorder %s11, 1
    %p127 = por %p125, %p126
    %p128 = scmp.ne.s32.totalorder %s120, %s123
    %p129 = scmp.eq.s32.totalorder %s11, 0
    %p130 = por %p128, %p129
    %p131 = scmp.ne.s32.totalorder %s120, %s123
    %p132 = scmp.eq.s32.totalorder %s16, 1
    %p133 = por %p131, %p132
    %p134 = scmp.ne.s32.totalorder %s123, %s124
    %p135 = scmp.eq.s32.totalorder %s16, 0
    %p136 = por %p134, %p135
    %p137 = scmp.ne.s32.totalorder %s123, %s124
    %p138 = scmp.eq.s32.totalorder %s17, 1
    %p139 = por %p137, %p138
    %p141 = scmp.ne.s32.totalorder %s124, %s140
    %p142 = scmp.eq.s32.totalorder %s17, 0
    %p143 = por %p141, %p142
    %p144 = scmp.le.s32.totalorder 1, %s11
    %p145 = scmp.lt.s32.totalorder %s11, 3
    %p146 = pnand %p144, %p145
    %p147 = pneg %p146
    // Predicated region
    $region9: #{_stem_forward.2} parent=5 // pred_check
      _
    $region10: #{_stem_forward.2} parent=5 // pred_check_branch
      %149 = sbr.rel (%p146) target = $region12
    $region11: #{_stem_forward.2} parent=5 // pred_region
      %s150 = ssub.s32 %s11, 1
      // Predicated region
      $region13: #{_stem_forward.2} parent=11 // pred_check
        %p151 = pneg %p58
      $region14: #{_stem_forward.2} parent=11 // pred_check_branch
        %153 = sbr.rel (%p151) target = $region16
      $region15: #{_stem_forward.2} parent=11 // pred_region
        _
      $region16: #{_stem_forward.2} parent=11 // pred_fallthru
        _
    $region12: #{_stem_forward.2} parent=5 // pred_fallthru
      _
    %p154 = scmp.lt.s32.totalorder %s11, 2
    // Predicated region
    $region17: #{_stem_forward.2} parent=5 // pred_check
      %p155 = pneg %p154
    $region18: #{_stem_forward.2} parent=5 // pred_check_branch
      %157 = sbr.rel (%p155) target = $region20
    $region19: #{_stem_forward.2} parent=5 // pred_region
      // Predicated region
      $region21: #{_stem_forward.2} parent=19 // pred_check
        %p158 = pneg %p31
      $region22: #{_stem_forward.2} parent=19 // pred_check_branch
        %160 = sbr.rel (%p158) target = $region24
      $region23: #{_stem_forward.2} parent=19 // pred_region
        %p161 = scmp.lt.s32.totalorder %s11, 1
        %s162 = scalar_select %p161, %s11, 1
        %s163 = smul.addr %s162, 32
        %s164 = smul.addr %s163, 4
        %s165 = scalar_lea.vmem %s0, %s164
      $region24: #{_stem_forward.2} parent=19 // pred_fallthru
        _
    $region20: #{_stem_forward.2} parent=5 // pred_fallthru
      _
    %p166 = scmp.le.s32.totalorder 1, %s11
    %p167 = scmp.lt.s32.totalorder %s11, 3
    %p168 = pnand %p166, %p167
    %p169 = pneg %p168
    // Predicated region
    $region25: #{_stem_forward.2} parent=5 // pred_check
      _
    $region26: #{_stem_forward.2} parent=5 // pred_check_branch
      %171 = sbr.rel (%p168) target = $region28
    $region27: #{_stem_forward.2} parent=5 // pred_region
      %s172 = ssub.s32 %s11, 1
      %p173 = scmp.lt.s32.totalorder %s16, 1
      %s174 = scalar_select %p173, %s16, 1
      %s175 = smul.addr %s174, 32
      %s176 = smul.addr %s175, 4
      %s177 = scalar_lea.vmem %s0, %s176
      %p178 = pneg %p37
      %p179 = pneg %p34
      %p180 = pneg %p58
      %p181 = pneg %p55
      %p182 = pneg %p84
      %p183 = pneg %p81
      %p184 = scmp.lt.s32.totalorder %s16, 1
      %s185 = scalar_select %p184, %s16, 1
      %s186 = smul.addr %s185, 16
      %s187 = smul.addr %s186, 8
      %s188 = scalar_lea.vmem %s2, %s187
      %p189 = pneg %p110
      %p190 = pneg %p107
      %p191 = scmp.lt.s32.totalorder %s16, 1
      %s192 = scalar_select %p191, %s16, 1
      %s193 = scalar_lea.vmem %s3, %s192
      %p194 = pneg %p136
      %p195 = pneg %p133
      %p196 = scmp.lt.s32.totalorder %s16, 1
      %s197 = scalar_select %p196, %s16, 1
      %s198 = scalar_lea.vmem %s4, %s197
      %p199 = scmp.lt.s32.totalorder %s16, 1
      %s200 = scalar_select %p199, %s16, 1
      %s201 = smul.addr %s200, 32
      %s202 = smul.addr %s201, 4
      %s203 = scalar_lea.vmem %s0, %s202
      %p204 = scmp.lt.s32.totalorder %s16, 1
      %s205 = scalar_select %p204, %s16, 1
      %s206 = smul.addr %s205, 16
      %s207 = smul.addr %s206, 8
      %s208 = scalar_lea.vmem %s2, %s207
      %p209 = scmp.lt.s32.totalorder %s16, 1
      %s210 = scalar_select %p209, %s16, 1
      %s211 = scalar_lea.vmem %s3, %s210
      %p212 = scmp.lt.s32.totalorder %s16, 1
      %s213 = scalar_select %p212, %s16, 1
      %s214 = scalar_lea.vmem %s4, %s213
      %v216 = vld [vmem:[%s203] sm:$0xff]
      %v217 = vld [vmem:[%s203 + $0x8] sm:$0xff]
      %v218 = vld [vmem:[%s203 + $0x10] sm:$0xff]
      %v219 = vld [vmem:[%s203 + $0x18] sm:$0xff]
      %v220 = vld [vmem:[%s203 + $0x20] sm:$0xff]
      %v221 = vld [vmem:[%s203 + $0x28] sm:$0xff]
      %v222 = vld [vmem:[%s203 + $0x30] sm:$0xff]
      %v223 = vld [vmem:[%s203 + $0x38] sm:$0xff]
      %v224 = vld [vmem:[%s203 + $0x40] sm:$0xff]
      %v225 = vld [vmem:[%s203 + $0x48] sm:$0xff]
      %v226 = vld [vmem:[%s203 + $0x50] sm:$0xff]
      %v227 = vld [vmem:[%s203 + $0x58] sm:$0xff]
      %v228 = vld [vmem:[%s203 + $0x60] sm:$0xff]
      %v229 = vld [vmem:[%s203 + $0x68] sm:$0xff]
      %v230 = vld [vmem:[%s203 + $0x70] sm:$0xff]
      %v231 = vld [vmem:[%s203 + $0x78] sm:$0xff]
      %v232 = vld [vmem:[%s1] sm:$0xf]
      %v233 = vld [vmem:[%s1 + $0x4] sm:$0xf]
      %v234 = vld [vmem:[%s1 + $0x8] sm:$0xf]
      %v235 = vld [vmem:[%s1 + $0xc] sm:$0xf]
      %v236 = vld [vmem:[%s1 + $0x10] sm:$0xf]
      %v237 = vld [vmem:[%s1 + $0x14] sm:$0xf]
      %v238 = vld [vmem:[%s1 + $0x18] sm:$0xf]
      %v239 = vld [vmem:[%s1 + $0x1c] sm:$0xf]
      %v240 = vld [vmem:[%s1 + $0x20] sm:$0xf]
      %v241 = vld [vmem:[%s1 + $0x24] sm:$0xf]
      %v242 = vld [vmem:[%s1 + $0x28] sm:$0xf]
      %v243 = vld [vmem:[%s1 + $0x2c] sm:$0xf]
      %v244 = vld [vmem:[%s1 + $0x30] sm:$0xf]
      %v245 = vld [vmem:[%s1 + $0x34] sm:$0xf]
      %v246 = vld [vmem:[%s1 + $0x38] sm:$0xf]
      %v247 = vld [vmem:[%s1 + $0x3c] sm:$0xf]
      %v248 = vld [vmem:[%s1 + $0x40] sm:$0xf]
      %v249 = vld [vmem:[%s1 + $0x44] sm:$0xf]
      %v250 = vld [vmem:[%s1 + $0x48] sm:$0xf]
      %v251 = vld [vmem:[%s1 + $0x4c] sm:$0xf]
      %v252 = vld [vmem:[%s1 + $0x50] sm:$0xf]
      %v253 = vld [vmem:[%s1 + $0x54] sm:$0xf]
      %v254 = vld [vmem:[%s1 + $0x58] sm:$0xf]
      %v255 = vld [vmem:[%s1 + $0x5c] sm:$0xf]
      %v256 = vld [vmem:[%s1 + $0x60] sm:$0xf]
      %v257 = vld [vmem:[%s1 + $0x64] sm:$0xf]
      %v258 = vld [vmem:[%s1 + $0x68] sm:$0xf]
      %v259 = vld [vmem:[%s1 + $0x6c] sm:$0xf]
      %v260 = vld [vmem:[%s1 + $0x70] sm:$0xf]
      %v261 = vld [vmem:[%s1 + $0x74] sm:$0xf]
      %v262 = vld [vmem:[%s1 + $0x78] sm:$0xf]
      %v263 = vld [vmem:[%s1 + $0x7c] sm:$0xf]
      %v280 = vunpack.c.l.b16 %v216
      %v281 = vunpack.c.h.b16 %v216
      %v282 = vunpack.c.l.b16 %v217
      %v283 = vunpack.c.h.b16 %v217
      %v284 = vunpack.c.l.b16 %v218
      %v285 = vunpack.c.h.b16 %v218
      %v286 = vunpack.c.l.b16 %v219
      %v287 = vunpack.c.h.b16 %v219
      %v288 = vunpack.c.l.b16 %v220
      %v289 = vunpack.c.h.b16 %v220
      %v290 = vunpack.c.l.b16 %v221
      %v291 = vunpack.c.h.b16 %v221
      %v292 = vunpack.c.l.b16 %v222
      %v293 = vunpack.c.h.b16 %v222
      %v294 = vunpack.c.l.b16 %v223
      %v295 = vunpack.c.h.b16 %v223
      %v296 = vunpack.c.l.b16 %v224
      %v297 = vunpack.c.h.b16 %v224
      %v298 = vunpack.c.l.b16 %v225
      %v299 = vunpack.c.h.b16 %v225
      %v300 = vunpack.c.l.b16 %v226
      %v301 = vunpack.c.h.b16 %v226
      %v302 = vunpack.c.l.b16 %v227
      %v303 = vunpack.c.h.b16 %v227
      %v304 = vunpack.c.l.b16 %v228
      %v305 = vunpack.c.h.b16 %v228
      %v306 = vunpack.c.l.b16 %v229
      %v307 = vunpack.c.h.b16 %v229
      %v308 = vunpack.c.l.b16 %v230
      %v309 = vunpack.c.h.b16 %v230
      %v310 = vunpack.c.l.b16 %v231
      %v311 = vunpack.c.h.b16 %v231
      %v312 = vpack.c.b16 %v282, %v280
      %v313 = vpack.c.b16 %v283, %v281
      %v314 = vpack.c.b16 %v286, %v284
      %v315 = vpack.c.b16 %v287, %v285
      %v316 = vpack.c.b16 %v290, %v288
      %v317 = vpack.c.b16 %v291, %v289
      %v318 = vpack.c.b16 %v294, %v292
      %v319 = vpack.c.b16 %v295, %v293
      %v320 = vpack.c.b16 %v298, %v296
      %v321 = vpack.c.b16 %v299, %v297
      %v322 = vpack.c.b16 %v302, %v300
      %v323 = vpack.c.b16 %v303, %v301
      %v324 = vpack.c.b16 %v306, %v304
      %v325 = vpack.c.b16 %v307, %v305
      %v326 = vpack.c.b16 %v310, %v308
      %v327 = vpack.c.b16 %v311, %v309
      %v376 = vunpack.c.l.b16 %v232
      %v377 = vunpack.c.l.b16 %v233
      %v378 = vunpack.c.l.b16 %v234
      %v379 = vunpack.c.l.b16 %v235
      %v380 = vunpack.c.l.b16 %v236
      %v381 = vunpack.c.l.b16 %v237
      %v382 = vunpack.c.l.b16 %v238
      %v383 = vunpack.c.l.b16 %v239
      %v384 = vunpack.c.l.b16 %v240
      %v385 = vunpack.c.l.b16 %v241
      %v386 = vunpack.c.l.b16 %v242
      %v387 = vunpack.c.l.b16 %v243
      %v388 = vunpack.c.l.b16 %v244
      %v389 = vunpack.c.l.b16 %v245
      %v390 = vunpack.c.l.b16 %v246
      %v391 = vunpack.c.l.b16 %v247
      %v392 = vunpack.c.l.b16 %v248
      %v393 = vunpack.c.l.b16 %v249
      %v394 = vunpack.c.l.b16 %v250
      %v395 = vunpack.c.l.b16 %v251
      %v396 = vunpack.c.l.b16 %v252
      %v397 = vunpack.c.l.b16 %v253
      %v398 = vunpack.c.l.b16 %v254
      %v399 = vunpack.c.l.b16 %v255
      %v400 = vunpack.c.l.b16 %v256
      %v401 = vunpack.c.l.b16 %v257
      %v402 = vunpack.c.l.b16 %v258
      %v403 = vunpack.c.l.b16 %v259
      %v404 = vunpack.c.l.b16 %v260
      %v405 = vunpack.c.l.b16 %v261
      %v406 = vunpack.c.l.b16 %v262
      %v407 = vunpack.c.l.b16 %v263
      %v408 = vpack.c.b16 %v377, %v376
      %v409 = vpack.c.b16 %v379, %v378
      %v410 = vpack.c.b16 %v381, %v380
      %v411 = vpack.c.b16 %v383, %v382
      %v412 = vpack.c.b16 %v385, %v384
      %v413 = vpack.c.b16 %v387, %v386
      %v414 = vpack.c.b16 %v389, %v388
      %v415 = vpack.c.b16 %v391, %v390
      %v416 = vpack.c.b16 %v393, %v392
      %v417 = vpack.c.b16 %v395, %v394
      %v418 = vpack.c.b16 %v397, %v396
      %v419 = vpack.c.b16 %v399, %v398
      %v420 = vpack.c.b16 %v401, %v400
      %v421 = vpack.c.b16 %v403, %v402
      %v422 = vpack.c.b16 %v405, %v404
      %v423 = vpack.c.b16 %v407, %v406
      %440 = vmatprep.subr.bf16.mxu0 0
      %441 = vmatpush1.bf16.msra.mxu0 %v408
      %442 = vmatprep.subr.bf16.mxu0 0
      %443 = vmatpush1.bf16.msra.mxu0 %v409
      %444 = vmatprep.subr.bf16.mxu0 0
      %445 = vmatpush1.bf16.msra.mxu0 %v410
      %446 = vmatprep.subr.bf16.mxu0 0
      %447 = vmatpush1.bf16.msra.mxu0 %v411
      %448 = vmatprep.subr.bf16.mxu0 0
      %449 = vmatpush1.bf16.msra.mxu0 %v412
      %450 = vmatprep.subr.bf16.mxu0 0
      %451 = vmatpush1.bf16.msra.mxu0 %v413
      %452 = vmatprep.subr.bf16.mxu0 0
      %453 = vmatpush1.bf16.msra.mxu0 %v414
      %454 = vmatprep.subr.bf16.mxu0 0
      %455 = vmatpush1.bf16.msra.mxu0 %v415
      %456 = vmatprep.subr.bf16.mxu0 0
      %457 = vmatpush1.bf16.msra.mxu0 %v416
      %458 = vmatprep.subr.bf16.mxu0 0
      %459 = vmatpush1.bf16.msra.mxu0 %v417
      %460 = vmatprep.subr.bf16.mxu0 0
      %461 = vmatpush1.bf16.msra.mxu0 %v418
      %462 = vmatprep.subr.bf16.mxu0 0
      %463 = vmatpush1.bf16.msra.mxu0 %v419
      %464 = vmatprep.subr.bf16.mxu0 0
      %465 = vmatpush1.bf16.msra.mxu0 %v420
      %466 = vmatprep.subr.bf16.mxu0 0
      %467 = vmatpush1.bf16.msra.mxu0 %v421
      %468 = vmatprep.subr.bf16.mxu0 0
      %469 = vmatpush1.bf16.msra.mxu0 %v422
      %470 = vmatprep.subr.bf16.mxu0 0
      %471 = vmatpush1.bf16.msra.mxu0 %v423
      %472 = vmatprep.mubr.bf16.mxu0 %v313
      %473 = vmatmul.mubr.bf16.gmra.mrb[0].mxu0 %v312
      %v474 = vpop.f32.mrb[0].mxu0
      %v475 = vadd.f32 0.0, %v474
      %v476 = vpop.f32.mrb[0].mxu0
      %v477 = vpop.f32.mrb[0].mxu0
      %v478 = vadd.f32 0.0, %v477
      %v479 = vpop.f32.mrb[0].mxu0
      %480 = vmatprep.mubr.bf16.mxu0 %v315
      %481 = vmatmul.mubr.bf16.gmra.mrb[0].mxu0 %v314
      %v482 = vpop.f32.mrb[0].mxu0
      %v483 = vadd.f32 0.0, %v482
      %v484 = vpop.f32.mrb[0].mxu0
      %v485 = vpop.f32.mrb[0].mxu0
      %v486 = vadd.f32 0.0, %v485
      %v487 = vpop.f32.mrb[0].mxu0
      %488 = vmatprep.mubr.bf16.mxu0 %v317
      %489 = vmatmul.mubr.bf16.gmra.mrb[0].mxu0 %v316
      %v490 = vpop.f32.mrb[0].mxu0
      %v491 = vadd.f32 0.0, %v490
      %v492 = vpop.f32.mrb[0].mxu0
      %v493 = vpop.f32.mrb[0].mxu0
      %v494 = vadd.f32 0.0, %v493
      %v495 = vpop.f32.mrb[0].mxu0
      %496 = vmatprep.mubr.bf16.mxu0 %v319
      %497 = vmatmul.mubr.bf16.gmra.mrb[0].mxu0 %v318
      %v498 = vpop.f32.mrb[0].mxu0
      %v499 = vadd.f32 0.0, %v498
      %v500 = vpop.f32.mrb[0].mxu0
      %v501 = vpop.f32.mrb[0].mxu0
      %v502 = vadd.f32 0.0, %v501
      %v503 = vpop.f32.mrb[0].mxu0
      %504 = vmatprep.mubr.bf16.mxu0 %v321
      %505 = vmatmul.mubr.bf16.gmra.mrb[0].mxu0 %v320
      %v506 = vpop.f32.mrb[0].mxu0
      %v507 = vadd.f32 0.0, %v506
      %v508 = vpop.f32.mrb[0].mxu0
      %v509 = vpop.f32.mrb[0].mxu0
      %v510 = vadd.f32 0.0, %v509
      %v511 = vpop.f32.mrb[0].mxu0
      %512 = vmatprep.mubr.bf16.mxu0 %v323
      %513 = vmatmul.mubr.bf16.gmra.mrb[0].mxu0 %v322
      %v514 = vpop.f32.mrb[0].mxu0
      %v515 = vadd.f32 0.0, %v514
      %v516 = vpop.f32.mrb[0].mxu0
      %v517 = vpop.f32.mrb[0].mxu0
      %v518 = vadd.f32 0.0, %v517
      %v519 = vpop.f32.mrb[0].mxu0
      %520 = vmatprep.mubr.bf16.mxu0 %v325
      %521 = vmatmul.mubr.bf16.gmra.mrb[0].mxu0 %v324
      %v522 = vpop.f32.mrb[0].mxu0
      %v523 = vadd.f32 0.0, %v522
      %v524 = vpop.f32.mrb[0].mxu0
      %v525 = vpop.f32.mrb[0].mxu0
      %v526 = vadd.f32 0.0, %v525
      %v527 = vpop.f32.mrb[0].mxu0
      %528 = vmatprep.mubr.bf16.mxu0 %v327
      %529 = vmatmul.mubr.bf16.gmra.mrb[0].mxu0 %v326
      %v530 = vpop.f32.mrb[0].mxu0
      %v531 = vadd.f32 0.0, %v530
      %v532 = vpop.f32.mrb[0].mxu0
      %v533 = vpop.f32.mrb[0].mxu0
      %v534 = vadd.f32 0.0, %v533
      %v535 = vpop.f32.mrb[0].mxu0
      %536 = vdwg.mxu0
      %vm537 = vcmask 523264
      %538 = vst.msk [vmem:[%s208] sm:$0xff] %vm537, %v475
      %539 = vst.msk [vmem:[%s208 + $0x8] sm:$0xff] %vm537, %v478
      %540 = vst.msk [vmem:[%s208 + $0x10] sm:$0xff] %vm537, %v483
      %541 = vst.msk [vmem:[%s208 + $0x18] sm:$0xff] %vm537, %v486
      %542 = vst.msk [vmem:[%s208 + $0x20] sm:$0xff] %vm537, %v491
      %543 = vst.msk [vmem:[%s208 + $0x28] sm:$0xff] %vm537, %v494
      %544 = vst.msk [vmem:[%s208 + $0x30] sm:$0xff] %vm537, %v499
      %545 = vst.msk [vmem:[%s208 + $0x38] sm:$0xff] %vm537, %v502
      %546 = vst.msk [vmem:[%s208 + $0x40] sm:$0xff] %vm537, %v507
      %547 = vst.msk [vmem:[%s208 + $0x48] sm:$0xff] %vm537, %v510
      %548 = vst.msk [vmem:[%s208 + $0x50] sm:$0xff] %vm537, %v515
      %549 = vst.msk [vmem:[%s208 + $0x58] sm:$0xff] %vm537, %v518
      %550 = vst.msk [vmem:[%s208 + $0x60] sm:$0xff] %vm537, %v523
      %551 = vst.msk [vmem:[%s208 + $0x68] sm:$0xff] %vm537, %v526
      %552 = vst.msk [vmem:[%s208 + $0x70] sm:$0xff] %vm537, %v531
      %553 = vst.msk [vmem:[%s208 + $0x78] sm:$0xff] %vm537, %v534
      %v554 = vsel %vm537, %v475, 0.0
      %v555 = vsel %vm537, %v478, 0.0
      %v556 = vadd.f32 %v554, %v555
      %v557 = vsel %vm537, %v483, 0.0
      %v558 = vadd.f32 %v556, %v557
      %v559 = vsel %vm537, %v486, 0.0
      %v560 = vadd.f32 %v558, %v559
      %v561 = vsel %vm537, %v491, 0.0
      %v562 = vadd.f32 %v560, %v561
      %v563 = vsel %vm537, %v494, 0.0
      %v564 = vadd.f32 %v562, %v563
      %v565 = vsel %vm537, %v499, 0.0
      %v566 = vadd.f32 %v564, %v565
      %v567 = vsel %vm537, %v502, 0.0
      %v568 = vadd.f32 %v566, %v567
      %v569 = vsel %vm537, %v507, 0.0
      %v570 = vadd.f32 %v568, %v569
      %v571 = vsel %vm537, %v510, 0.0
      %v572 = vadd.f32 %v570, %v571
      %v573 = vsel %vm537, %v515, 0.0
      %v574 = vadd.f32 %v572, %v573
      %v575 = vsel %vm537, %v518, 0.0
      %v576 = vadd.f32 %v574, %v575
      %v577 = vsel %vm537, %v523, 0.0
      %v578 = vadd.f32 %v576, %v577
      %v579 = vsel %vm537, %v526, 0.0
      %v580 = vadd.f32 %v578, %v579
      %v581 = vsel %vm537, %v531, 0.0
      %v582 = vadd.f32 %v580, %v581
      %v583 = vsel %vm537, %v534, 0.0
      %v584 = vadd.f32 %v582, %v583
      %v585 = vrot.slane %v584, 4
      %v586 = vadd.f32 %v584, %v585
      %v587 = vrot.slane %v586, 2
      %v588 = vadd.f32 %v586, %v587
      %v589 = vrot.slane %v588, 1
      %v590 = vadd.f32 %v588, %v589
      %vm591 = vcmask 516096
      %592 = vst.msk [vmem:[%s211] sm:$0x1] %vm591, %v590
      %v593 = vmul.f32 %v475, %v475
      %v594 = vmul.f32 %v478, %v478
      %v595 = vmul.f32 %v483, %v483
      %v596 = vmul.f32 %v486, %v486
      %v597 = vmul.f32 %v491, %v491
      %v598 = vmul.f32 %v494, %v494
      %v599 = vmul.f32 %v499, %v499
      %v600 = vmul.f32 %v502, %v502
      %v601 = vmul.f32 %v507, %v507
      %v602 = vmul.f32 %v510, %v510
      %v603 = vmul.f32 %v515, %v515
      %v604 = vmul.f32 %v518, %v518
      %v605 = vmul.f32 %v523, %v523
      %v606 = vmul.f32 %v526, %v526
      %v607 = vmul.f32 %v531, %v531
      %v608 = vmul.f32 %v534, %v534
      %v609 = vsel %vm537, %v593, 0.0
      %v610 = vsel %vm537, %v594, 0.0
      %v611 = vadd.f32 %v609, %v610
      %v612 = vsel %vm537, %v595, 0.0
      %v613 = vadd.f32 %v611, %v612
      %v614 = vsel %vm537, %v596, 0.0
      %v615 = vadd.f32 %v613, %v614
      %v616 = vsel %vm537, %v597, 0.0
      %v617 = vadd.f32 %v615, %v616
      %v618 = vsel %vm537, %v598, 0.0
      %v619 = vadd.f32 %v617, %v618
      %v620 = vsel %vm537, %v599, 0.0
      %v621 = vadd.f32 %v619, %v620
      %v622 = vsel %vm537, %v600, 0.0
      %v623 = vadd.f32 %v621, %v622
      %v624 = vsel %vm537, %v601, 0.0
      %v625 = vadd.f32 %v623, %v624
      %v626 = vsel %vm537, %v602, 0.0
      %v627 = vadd.f32 %v625, %v626
      %v628 = vsel %vm537, %v603, 0.0
      %v629 = vadd.f32 %v627, %v628
      %v630 = vsel %vm537, %v604, 0.0
      %v631 = vadd.f32 %v629, %v630
      %v632 = vsel %vm537, %v605, 0.0
      %v633 = vadd.f32 %v631, %v632
      %v634 = vsel %vm537, %v606, 0.0
      %v635 = vadd.f32 %v633, %v634
      %v636 = vsel %vm537, %v607, 0.0
      %v637 = vadd.f32 %v635, %v636
      %v638 = vsel %vm537, %v608, 0.0
      %v639 = vadd.f32 %v637, %v638
      %v640 = vrot.slane %v639, 4
      %v641 = vadd.f32 %v639, %v640
      %v642 = vrot.slane %v641, 2
      %v643 = vadd.f32 %v641, %v642
      %v644 = vrot.slane %v643, 1
      %v645 = vadd.f32 %v643, %v644
      %646 = vst.msk [vmem:[%s214] sm:$0x1] %vm591, %v645
      %p647 = scmp.lt.s32.totalorder %s16, 1
      %s648 = scalar_select %p647, %s16, 1
      %s649 = smul.addr %s648, 16
      %s650 = smul.addr %s649, 8
      %s651 = scalar_lea.vmem %s2, %s650
      %p652 = scmp.lt.s32.totalorder %s16, 1
      %s653 = scalar_select %p652, %s16, 1
      %s654 = scalar_lea.vmem %s3, %s653
      %p655 = scmp.lt.s32.totalorder %s16, 1
      %s656 = scalar_select %p655, %s16, 1
      %s657 = scalar_lea.vmem %s4, %s656
      // Predicated region
      $region29: #{_stem_forward.2} parent=27 // pred_check
        %p658 = pneg %p81
      $region30: #{_stem_forward.2} parent=27 // pred_check_branch
        %660 = sbr.rel (%p658) target = $region32
      $region31: #{_stem_forward.2} parent=27 // pred_region
        _
      $region32: #{_stem_forward.2} parent=27 // pred_fallthru
        _
      // Predicated region
      $region33: #{_stem_forward.2} parent=27 // pred_check
        %p661 = pneg %p107
      $region34: #{_stem_forward.2} parent=27 // pred_check_branch
        %663 = sbr.rel (%p661) target = $region36
      $region35: #{_stem_forward.2} parent=27 // pred_region
        _
      $region36: #{_stem_forward.2} parent=27 // pred_fallthru
        _
      // Predicated region
      $region37: #{_stem_forward.2} parent=27 // pred_check
        %p664 = pneg %p133
      $region38: #{_stem_forward.2} parent=27 // pred_check_branch
        %666 = sbr.rel (%p664) target = $region40
      $region39: #{_stem_forward.2} parent=27 // pred_region
        _
      $region40: #{_stem_forward.2} parent=27 // pred_fallthru
        _
    $region28: #{_stem_forward.2} parent=5 // pred_fallthru
      _
    %p667 = scmp.le.s32.totalorder 2, %s11
    // Predicated region
    $region41: #{_stem_forward.2} parent=5 // pred_check
      %p668 = pneg %p667
    $region42: #{_stem_forward.2} parent=5 // pred_check_branch
      %670 = sbr.rel (%p668) target = $region44
    $region43: #{_stem_forward.2} parent=5 // pred_region
      %s671 = ssub.s32 %s11, 2
      // Predicated region
      $region45: #{_stem_forward.2} parent=43 // pred_check
        %p672 = pneg %p87
      $region46: #{_stem_forward.2} parent=43 // pred_check_branch
        %674 = sbr.rel (%p672) target = $region48
      $region47: #{_stem_forward.2} parent=43 // pred_region
        %p675 = scmp.lt.s32.totalorder %s17, 1
        %s676 = scalar_select %p675, %s17, 1
        %s677 = smul.addr %s676, 16
        %s678 = smul.addr %s677, 8
        %s679 = scalar_lea.vmem %s2, %s678
      $region48: #{_stem_forward.2} parent=43 // pred_fallthru
        _
      // Predicated region
      $region49: #{_stem_forward.2} parent=43 // pred_check
        %p680 = pneg %p113
      $region50: #{_stem_forward.2} parent=43 // pred_check_branch
        %682 = sbr.rel (%p680) target = $region52
      $region51: #{_stem_forward.2} parent=43 // pred_region
        %p683 = scmp.lt.s32.totalorder %s17, 1
        %s684 = scalar_select %p683, %s17, 1
        %s685 = scalar_lea.vmem %s3, %s684
      $region52: #{_stem_forward.2} parent=43 // pred_fallthru
        _
      // Predicated region
      $region53: #{_stem_forward.2} parent=43 // pred_check
        %p686 = pneg %p139
      $region54: #{_stem_forward.2} parent=43 // pred_check_branch
        %688 = sbr.rel (%p686) target = $region56
      $region55: #{_stem_forward.2} parent=43 // pred_region
        %p689 = scmp.lt.s32.totalorder %s17, 1
        %s690 = scalar_select %p689, %s17, 1
        %s691 = scalar_lea.vmem %s4, %s690
      $region56: #{_stem_forward.2} parent=43 // pred_fallthru
        _
    $region44: #{_stem_forward.2} parent=5 // pred_fallthru
      _
  $region6: #{_stem_forward.2} parent=0 // loop_footer
    %s15 = sadd.s32 1, %s11
  $region7: #{_stem_forward.2} parent=0 // loop_footer_branch
    %10 = sbr.rel target = $region3
  $region8: #{_stem_forward.2} parent=0 // loop_exit
    _

</llo_original>
